<compile_context>
chip_gen: v7x
topology: tpu7x:2x2x1
jax: 0.10.0
libtpu: 0.0.40
codegen_flags: <defaults>
</compile_context>

<pallas_src>
import jax
import jax.numpy as jnp
from jax.experimental import pallas as pl
from jax.experimental.pallas import tpu as pltpu


def _round_up(n, m):
    return ((n + m - 1) // m) * m


def actor_kernel(x_ref, w1_ref, w2_ref, w3_ref, b_ref, o_ref):
    """One batch tile: fc1 -> ReLU -> fc2 -> ReLU -> fc3 -> softmax (lane axis)."""
    Hp = w1_ref.shape[1]          # padded hidden dim (multiple of 128)
    Op = w3_ref.shape[1]          # padded output dim (multiple of 128)
    b1 = b_ref[0:1, 0:Hp]         # f32 biases, broadcast over rows in the adds
    b2 = b_ref[1:2, 0:Hp]
    b3 = b_ref[2:3, 0:Op]         # padded class lanes hold -1e30 -> exp() == 0

    # x arrives un-padded f32; cast to bf16 in-kernel (no wrapper-side cast launch).
    x = x_ref[...].astype(w1_ref.dtype)

    # fc1 + ReLU (bf16 MXU operands, f32 accumulate)
    h1 = jnp.dot(x, w1_ref[...], preferred_element_type=jnp.float32)
    h1 = jnp.maximum(h1 + b1, 0.0).astype(w2_ref.dtype)

    # fc2 + ReLU
    h2 = jnp.dot(h1, w2_ref[...], preferred_element_type=jnp.float32)
    h2 = jnp.maximum(h2 + b2, 0.0).astype(w3_ref.dtype)

    # fc3
    logits = jnp.dot(h2, w3_ref[...], preferred_element_type=jnp.float32) + b3

    # numerically stable softmax over the lane (class) axis, f32 throughout.
    # Exact division (not approx reciprocal): RL probabilities must sum to 1.
    m = jnp.max(logits, axis=-1, keepdims=True)
    e = jnp.exp(logits - m)
    denom = jnp.sum(e, axis=-1, keepdims=True)
    o_ref[...] = (e / denom).astype(o_ref.dtype)


def init_actor_params(key, input_dim, output_dim, hidden_dim):
    """Deterministic init mimicking nn.Linear's uniform(-1/sqrt(fan_in), 1/sqrt(fan_in)).

    Weights stored as (in_features, out_features) so the kernel does x @ W + b,
    matching PyTorch's y = x @ W_pt.T + b.
    """
    ks = jax.random.split(key, 6)

    def linear(kw, kb, fan_in, fan_out):
        bound = 1.0 / jnp.sqrt(jnp.float32(fan_in))
        w = jax.random.uniform(kw, (fan_in, fan_out), jnp.float32, -bound, bound)
        b = jax.random.uniform(kb, (1, fan_out), jnp.float32, -bound, bound)
        return w, b

    w1, b1 = linear(ks[0], ks[1], input_dim, hidden_dim)
    w2, b2 = linear(ks[2], ks[3], hidden_dim, hidden_dim)
    w3, b3 = linear(ks[4], ks[5], hidden_dim, output_dim)
    return (w1, b1, w2, b2, w3, b3)


def pack_actor_params(params, compute_dtype=jnp.bfloat16):
    """One-time packing: pad hidden/output dims to 128 lanes, cast weights to bf16,
    pack the 3 biases into a single (8, P) f32 slab.  The first matmul's K (=input_dim)
    is left UN-padded so x needs no wrapper-side pad and its DMA carries only real
    bytes (Mosaic pads short K internally for the MXU).  Padded output-bias lanes get
    -1e30 so they contribute nothing to the softmax."""
    w1, b1, w2, b2, w3, b3 = params
    input_dim, hidden_dim = w1.shape
    output_dim = w3.shape[1]
    Hp = _round_up(hidden_dim, 128)
    Op = _round_up(output_dim, 128)

    w1p = jnp.zeros((input_dim, Hp), compute_dtype).at[:, :hidden_dim].set(
        w1.astype(compute_dtype))
    w2p = jnp.zeros((Hp, Hp), compute_dtype).at[:hidden_dim, :hidden_dim].set(
        w2.astype(compute_dtype))
    w3p = jnp.zeros((Hp, Op), compute_dtype).at[:hidden_dim, :output_dim].set(
        w3.astype(compute_dtype))

    P = max(Hp, Op)
    bpack = jnp.zeros((8, P), jnp.float32)
    bpack = bpack.at[0, :hidden_dim].set(b1.reshape(-1))
    bpack = bpack.at[1, :hidden_dim].set(b2.reshape(-1))
    bpack = bpack.at[2, :Op].set(jnp.full((Op,), -1e30, jnp.float32))
    bpack = bpack.at[2, :output_dim].set(b3.reshape(-1))
    return (w1p, w2p, w3p, bpack, output_dim)


def actor_forward(x, packed, block_batch=None):
    """x: (batch, input_dim) f32 (un-padded). Returns (batch, output_dim) f32 softmax probs."""
    w1p, w2p, w3p, bpack, out_dim = packed
    batch, in_dim = x.shape
    assert in_dim == w1p.shape[0], "x feature dim must match packed w1"
    Op = w3p.shape[1]

    if block_batch is None:
        # Big tiles amortize the ~0.35 us/grid-step overhead; targeting ceil(batch/2)
        # guarantees >=2 grid tiles whenever the batch allows, so both v7x TCs engage.
        block_batch = pl.cdiv(batch, 2)
    # Multiple of 16 (bf16 sublane quantum for the intermediate activations); cap at
    # 256 rows to keep the live (TB,128) f32 temporaries (h1/h2/logits/e) from
    # pushing the vld/vst slots into the spill regime.
    TB = min(256, max(16, _round_up(block_batch, 16)))
    if TB >= batch:
        TB = batch                     # full-extent row block is always legal
    num_tiles = pl.cdiv(batch, TB)     # trailing tile may be partial: OOB rows are
                                       # read as garbage and never written back.

    def make_call(single_buffer_weights):
        def const_spec(shape):
            # Constant index_map -> DMA'ed once, stays VMEM-resident across tiles.
            if single_buffer_weights:
                return pl.BlockSpec(shape, lambda i: (0, 0),
                                    pipeline_mode=pl.Buffered(1))
            return pl.BlockSpec(shape, lambda i: (0, 0))

        return pl.pallas_call(
            actor_kernel,
            out_shape=jax.ShapeDtypeStruct((batch, Op), jnp.float32),
            grid=(num_tiles,),
            in_specs=[
                # x tile: un-padded K (block last dim == full array dim), pipelined
                # over the batch grid.
                pl.BlockSpec((TB, in_dim), lambda i: (i, 0)),
                const_spec(w1p.shape),
                const_spec(w2p.shape),
                const_spec(w3p.shape),
                const_spec(bpack.shape),
            ],
            # lane-dense (Op = multiple of 128) output -> unmasked vst
            out_specs=pl.BlockSpec((TB, Op), lambda i: (i, 0)),
            compiler_params=pltpu.CompilerParams(
                dimension_semantics=("parallel",),   # shard batch tiles over v7x's 2 TCs
            ),
        )

    try:
        # Single-buffer the resident weights/bias slab: halves their VMEM footprint
        # (the scaling hazard once hidden_dim grows toward production sizes).
        out = make_call(True)(x, w1p, w2p, w3p, bpack)
    except Exception:
        # Fallback if this jax build rejects pl.Buffered(1): default double-buffering
        # is functionally identical, just uses 2x VMEM for the resident operands.
        out = make_call(False)(x, w1p, w2p, w3p, bpack)

    return out[:, :out_dim]


def actor_reference(x, params):
    """Plain-JAX reference (PyTorch forward semantics)."""
    w1, b1, w2, b2, w3, b3 = params
    h1 = jnp.maximum(x @ w1 + b1, 0.0)
    h2 = jnp.maximum(h1 @ w2 + b2, 0.0)
    return jax.nn.softmax(h2 @ w3 + b3, axis=1)


if __name__ == "__main__":
    key = jax.random.PRNGKey(0)
    k_x, k_p = jax.random.split(key)

    batch, input_dim, hidden_dim, output_dim = 50, 16, 32, 8
    x = jax.random.normal(k_x, (batch, input_dim), jnp.float32)
    params = init_actor_params(k_p, input_dim, output_dim, hidden_dim)
    packed = pack_actor_params(params)              # one-time pad + bf16 cast

    # default tiling: TB=32 -> grid=(2,), exercises multi-tile + partial trailing tile
    out = actor_forward(x, packed)
    out = jax.block_until_ready(out)

    # reference with the same bf16-rounded x/weights (isolates kernel error from the
    # intentional bf16 quantization of the MXU operands)
    w1, b1, w2, b2, w3, b3 = params
    x_bf = x.astype(jnp.bfloat16).astype(jnp.float32)
    rounded = (w1.astype(jnp.bfloat16).astype(jnp.float32), b1,
               w2.astype(jnp.bfloat16).astype(jnp.float32), b2,
               w3.astype(jnp.bfloat16).astype(jnp.float32), b3)
    ref_rounded = actor_reference(x_bf, rounded)
    ref_full = actor_reference(x, params)

    assert out.shape == (batch, output_dim)
    assert jnp.allclose(out, ref_rounded, atol=5e-3, rtol=5e-2)
    assert jnp.allclose(out, ref_full, atol=2e-2, rtol=5e-2)
    # exact-division softmax -> rows sum to 1 to f32 precision
    assert jnp.allclose(jnp.sum(out, axis=1), jnp.ones((batch,)), atol=1e-4)

    print("KERNEL_OK")
</pallas_src>

<mosaic_0001>
module attributes {stable_mosaic.version = 11 : i64} {
  func.func @actor_kernel(%arg0: i32, %arg1: memref<32x16xf32, #tpu.memory_space<vmem>>, %arg2: memref<16x128xbf16, #tpu.memory_space<vmem>>, %arg3: memref<128x128xbf16, #tpu.memory_space<vmem>>, %arg4: memref<128x128xbf16, #tpu.memory_space<vmem>>, %arg5: memref<8x128xf32, #tpu.memory_space<vmem>>, %arg6: memref<32x128xf32, #tpu.memory_space<vmem>>) attributes {dimension_semantics = [#tpu.dimension_semantics<parallel>], iteration_bounds = array<i64: 2>, scalar_prefetch = 0 : i64, scratch_operands = 0 : i64, tpu.core_type = #tpu.core_type<tc>, window_params = [{transform_indices = @transform_0, window_bounds = array<i64: 32, 16>}, {pipeline_mode = #tpu.pipeline_mode<synchronous>, transform_indices = @transform_1, window_bounds = array<i64: 16, 128>}, {pipeline_mode = #tpu.pipeline_mode<synchronous>, transform_indices = @transform_2, window_bounds = array<i64: 128, 128>}, {pipeline_mode = #tpu.pipeline_mode<synchronous>, transform_indices = @transform_3, window_bounds = array<i64: 128, 128>}, {pipeline_mode = #tpu.pipeline_mode<synchronous>, transform_indices = @transform_4, window_bounds = array<i64: 8, 128>}, {transform_indices = @transform_5, window_bounds = array<i64: 32, 128>}]} {
    %c0 = arith.constant 0 : index
    %c0_0 = arith.constant 0 : index
    %0 = vector.load %arg5[%c0, %c0_0] : memref<8x128xf32, #tpu.memory_space<vmem>>, vector<1x128xf32>
    %c1 = arith.constant 1 : index
    %c0_1 = arith.constant 0 : index
    %1 = vector.load %arg5[%c1, %c0_1] : memref<8x128xf32, #tpu.memory_space<vmem>>, vector<1x128xf32>
    %c2 = arith.constant 2 : index
    %c0_2 = arith.constant 0 : index
    %2 = vector.load %arg5[%c2, %c0_2] : memref<8x128xf32, #tpu.memory_space<vmem>>, vector<1x128xf32>
    %c0_3 = arith.constant 0 : index
    %c0_4 = arith.constant 0 : index
    %3 = vector.load %arg1[%c0_3, %c0_4] : memref<32x16xf32, #tpu.memory_space<vmem>>, vector<32x16xf32>
    %4 = arith.truncf %3 : vector<32x16xf32> to vector<32x16xbf16>
    %c0_5 = arith.constant 0 : index
    %c0_6 = arith.constant 0 : index
    %5 = vector.load %arg2[%c0_5, %c0_6] : memref<16x128xbf16, #tpu.memory_space<vmem>>, vector<16x128xbf16>
    %cst = arith.constant dense<0.000000e+00> : vector<32x128xf32>
    %6 = tpu.matmul %4, %5, %cst {dimension_numbers = #tpu.dot_dimension_numbers<[1], [0], [0], [1], [0, 0, 1, 1], [], []>} : vector<32x16xbf16>, vector<16x128xbf16>, vector<32x128xf32> -> vector<32x128xf32>
    %7 = vector.broadcast %0 : vector<1x128xf32> to vector<32x128xf32>
    %8 = arith.addf %6, %7 : vector<32x128xf32>
    %cst_7 = arith.constant 0.000000e+00 : f32
    %9 = vector.broadcast %cst_7 : f32 to vector<32x128xf32>
    %10 = arith.maximumf %8, %9 : vector<32x128xf32>
    %11 = arith.truncf %10 : vector<32x128xf32> to vector<32x128xbf16>
    %c0_8 = arith.constant 0 : index
    %c0_9 = arith.constant 0 : index
    %12 = vector.load %arg3[%c0_8, %c0_9] : memref<128x128xbf16, #tpu.memory_space<vmem>>, vector<128x128xbf16>
    %cst_10 = arith.constant dense<0.000000e+00> : vector<32x128xf32>
    %13 = tpu.matmul %11, %12, %cst_10 {dimension_numbers = #tpu.dot_dimension_numbers<[1], [0], [0], [1], [0, 0, 1, 1], [], []>} : vector<32x128xbf16>, vector<128x128xbf16>, vector<32x128xf32> -> vector<32x128xf32>
    %14 = vector.broadcast %1 : vector<1x128xf32> to vector<32x128xf32>
    %15 = arith.addf %13, %14 : vector<32x128xf32>
    %cst_11 = arith.constant 0.000000e+00 : f32
    %16 = vector.broadcast %cst_11 : f32 to vector<32x128xf32>
    %17 = arith.maximumf %15, %16 : vector<32x128xf32>
    %18 = arith.truncf %17 : vector<32x128xf32> to vector<32x128xbf16>
    %c0_12 = arith.constant 0 : index
    %c0_13 = arith.constant 0 : index
    %19 = vector.load %arg4[%c0_12, %c0_13] : memref<128x128xbf16, #tpu.memory_space<vmem>>, vector<128x128xbf16>
    %cst_14 = arith.constant dense<0.000000e+00> : vector<32x128xf32>
    %20 = tpu.matmul %18, %19, %cst_14 {dimension_numbers = #tpu.dot_dimension_numbers<[1], [0], [0], [1], [0, 0, 1, 1], [], []>} : vector<32x128xbf16>, vector<128x128xbf16>, vector<32x128xf32> -> vector<32x128xf32>
    %21 = vector.broadcast %2 : vector<1x128xf32> to vector<32x128xf32>
    %22 = arith.addf %20, %21 : vector<32x128xf32>
    %cst_15 = arith.constant dense<0xFF800000> : vector<32xf32>
    %23 = vector.multi_reduction <maximumf>, %22, %cst_15 [1] : vector<32x128xf32> to vector<32xf32>
    %24 = vector.shape_cast %23 : vector<32xf32> to vector<32x1xf32>
    %25 = vector.broadcast %24 : vector<32x1xf32> to vector<32x128xf32>
    %26 = arith.subf %22, %25 : vector<32x128xf32>
    %27 = math.exp %26 : vector<32x128xf32>
    %cst_16 = arith.constant dense<0.000000e+00> : vector<32xf32>
    %28 = vector.multi_reduction <add>, %27, %cst_16 [1] : vector<32x128xf32> to vector<32xf32>
    %29 = vector.shape_cast %28 : vector<32xf32> to vector<32x1xf32>
    %30 = vector.broadcast %29 : vector<32x1xf32> to vector<32x128xf32>
    %31 = arith.divf %27, %30 : vector<32x128xf32>
    %c0_17 = arith.constant 0 : index
    %c0_18 = arith.constant 0 : index
    %32 = vector.load %arg6[%c0_17, %c0_18] : memref<32x128xf32, #tpu.memory_space<vmem>>, vector<32x128xf32>
    tpu.vector_store %arg6[%c0_17, %c0_18], %31 {strides = array<i32>} : memref<32x128xf32, #tpu.memory_space<vmem>>, vector<32x128xf32>,
    return
  }
  func.func @transform_0(%arg0: i32) -> (i32, i32) {
    %c0_i32 = arith.constant 0 : i32
    %c0_i32_0 = arith.constant 0 : i32
    return %arg0, %c0_i32 : i32, i32
  }
  func.func @transform_1(%arg0: i32) -> (i32, i32) {
    %c0_i32 = arith.constant 0 : i32
    %c0_i32_0 = arith.constant 0 : i32
    %c0_i32_1 = arith.constant 0 : i32
    return %c0_i32, %c0_i32_0 : i32, i32
  }
  func.func @transform_2(%arg0: i32) -> (i32, i32) {
    %c0_i32 = arith.constant 0 : i32
    %c0_i32_0 = arith.constant 0 : i32
    %c0_i32_1 = arith.constant 0 : i32
    return %c0_i32, %c0_i32_0 : i32, i32
  }
  func.func @transform_3(%arg0: i32) -> (i32, i32) {
    %c0_i32 = arith.constant 0 : i32
    %c0_i32_0 = arith.constant 0 : i32
    %c0_i32_1 = arith.constant 0 : i32
    return %c0_i32, %c0_i32_0 : i32, i32
  }
  func.func @transform_4(%arg0: i32) -> (i32, i32) {
    %c0_i32 = arith.constant 0 : i32
    %c0_i32_0 = arith.constant 0 : i32
    %c0_i32_1 = arith.constant 0 : i32
    return %c0_i32, %c0_i32_0 : i32, i32
  }
  func.func @transform_5(%arg0: i32) -> (i32, i32) {
    %c0_i32 = arith.constant 0 : i32
    %c0_i32_0 = arith.constant 0 : i32
    return %arg0, %c0_i32 : i32, i32
  }
}

module attributes {stable_mosaic.version = 11 : i64} {
  func.func @actor_kernel(%arg0: i32, %arg1: memref<32x16xf32, #tpu.memory_space<vmem>>, %arg2: memref<16x128xbf16, #tpu.memory_space<vmem>>, %arg3: memref<128x128xbf16, #tpu.memory_space<vmem>>, %arg4: memref<128x128xbf16, #tpu.memory_space<vmem>>, %arg5: memref<8x128xf32, #tpu.memory_space<vmem>>, %arg6: memref<32x128xf32, #tpu.memory_space<vmem>>) attributes {dimension_semantics = [#tpu.dimension_semantics<parallel>], iteration_bounds = array<i64: 2>, scalar_prefetch = 0 : i64, scratch_operands = 0 : i64, tpu.core_type = #tpu.core_type<tc>, window_params = [{transform_indices = @transform_0, window_bounds = array<i64: 32, 16>}, {pipeline_mode = #tpu.pipeline_mode<synchronous>, transform_indices = @transform_1, window_bounds = array<i64: 16, 128>}, {pipeline_mode = #tpu.pipeline_mode<synchronous>, transform_indices = @transform_2, window_bounds = array<i64: 128, 128>}, {pipeline_mode = #tpu.pipeline_mode<synchronous>, transform_indices = @transform_3, window_bounds = array<i64: 128, 128>}, {pipeline_mode = #tpu.pipeline_mode<synchronous>, transform_indices = @transform_4, window_bounds = array<i64: 8, 128>}, {transform_indices = @transform_5, window_bounds = array<i64: 32, 128>}]} {
    %c0 = arith.constant 0 : index
    %c0_0 = arith.constant 0 : index
    %0 = vector.load %arg5[%c0, %c0_0] : memref<8x128xf32, #tpu.memory_space<vmem>>, vector<1x128xf32>
    %c1 = arith.constant 1 : index
    %c0_1 = arith.constant 0 : index
    %1 = vector.load %arg5[%c1, %c0_1] : memref<8x128xf32, #tpu.memory_space<vmem>>, vector<1x128xf32>
    %c2 = arith.constant 2 : index
    %c0_2 = arith.constant 0 : index
    %2 = vector.load %arg5[%c2, %c0_2] : memref<8x128xf32, #tpu.memory_space<vmem>>, vector<1x128xf32>
    %c0_3 = arith.constant 0 : index
    %c0_4 = arith.constant 0 : index
    %3 = vector.load %arg1[%c0_3, %c0_4] : memref<32x16xf32, #tpu.memory_space<vmem>>, vector<32x16xf32>
    %4 = arith.truncf %3 : vector<32x16xf32> to vector<32x16xbf16>
    %c0_5 = arith.constant 0 : index
    %c0_6 = arith.constant 0 : index
    %5 = vector.load %arg2[%c0_5, %c0_6] : memref<16x128xbf16, #tpu.memory_space<vmem>>, vector<16x128xbf16>
    %cst = arith.constant dense<0.000000e+00> : vector<32x128xf32>
    %6 = tpu.matmul %4, %5, %cst {dimension_numbers = #tpu.dot_dimension_numbers<[1], [0], [0], [1], [0, 0, 1, 1], [], []>} : vector<32x16xbf16>, vector<16x128xbf16>, vector<32x128xf32> -> vector<32x128xf32>
    %7 = vector.broadcast %0 : vector<1x128xf32> to vector<32x128xf32>
    %8 = arith.addf %6, %7 : vector<32x128xf32>
    %cst_7 = arith.constant 0.000000e+00 : f32
    %9 = vector.broadcast %cst_7 : f32 to vector<32x128xf32>
    %10 = arith.maximumf %8, %9 : vector<32x128xf32>
    %11 = arith.truncf %10 : vector<32x128xf32> to vector<32x128xbf16>
    %c0_8 = arith.constant 0 : index
    %c0_9 = arith.constant 0 : index
    %12 = vector.load %arg3[%c0_8, %c0_9] : memref<128x128xbf16, #tpu.memory_space<vmem>>, vector<128x128xbf16>
    %cst_10 = arith.constant dense<0.000000e+00> : vector<32x128xf32>
    %13 = tpu.matmul %11, %12, %cst_10 {dimension_numbers = #tpu.dot_dimension_numbers<[1], [0], [0], [1], [0, 0, 1, 1], [], []>} : vector<32x128xbf16>, vector<128x128xbf16>, vector<32x128xf32> -> vector<32x128xf32>
    %14 = vector.broadcast %1 : vector<1x128xf32> to vector<32x128xf32>
    %15 = arith.addf %13, %14 : vector<32x128xf32>
    %cst_11 = arith.constant 0.000000e+00 : f32
    %16 = vector.broadcast %cst_11 : f32 to vector<32x128xf32>
    %17 = arith.maximumf %15, %16 : vector<32x128xf32>
    %18 = arith.truncf %17 : vector<32x128xf32> to vector<32x128xbf16>
    %c0_12 = arith.constant 0 : index
    %c0_13 = arith.constant 0 : index
    %19 = vector.load %arg4[%c0_12, %c0_13] : memref<128x128xbf16, #tpu.memory_space<vmem>>, vector<128x128xbf16>
    %cst_14 = arith.constant dense<0.000000e+00> : vector<32x128xf32>
    %20 = tpu.matmul %18, %19, %cst_14 {dimension_numbers = #tpu.dot_dimension_numbers<[1], [0], [0], [1], [0, 0, 1, 1], [], []>} : vector<32x128xbf16>, vector<128x128xbf16>, vector<32x128xf32> -> vector<32x128xf32>
    %21 = vector.broadcast %2 : vector<1x128xf32> to vector<32x128xf32>
    %22 = arith.addf %20, %21 : vector<32x128xf32>
    %cst_15 = arith.constant dense<0xFF800000> : vector<32xf32>
    %23 = vector.multi_reduction <maximumf>, %22, %cst_15 [1] : vector<32x128xf32> to vector<32xf32>
    %24 = vector.shape_cast %23 : vector<32xf32> to vector<32x1xf32>
    %25 = vector.broadcast %24 : vector<32x1xf32> to vector<32x128xf32>
    %26 = arith.subf %22, %25 : vector<32x128xf32>
    %27 = math.exp %26 : vector<32x128xf32>
    %cst_16 = arith.constant dense<0.000000e+00> : vector<32xf32>
    %28 = vector.multi_reduction <add>, %27, %cst_16 [1] : vector<32x128xf32> to vector<32xf32>
    %29 = vector.shape_cast %28 : vector<32xf32> to vector<32x1xf32>
    %30 = vector.broadcast %29 : vector<32x1xf32> to vector<32x128xf32>
    %31 = arith.divf %27, %30 : vector<32x128xf32>
    %c0_17 = arith.constant 0 : index
    %c0_18 = arith.constant 0 : index
    %32 = vector.load %arg6[%c0_17, %c0_18] : memref<32x128xf32, #tpu.memory_space<vmem>>, vector<32x128xf32>
    tpu.vector_store %arg6[%c0_17, %c0_18], %31 {strides = array<i32>} : memref<32x128xf32, #tpu.memory_space<vmem>>, vector<32x128xf32>,
    return
  }
  func.func @transform_0(%arg0: i32) -> (i32, i32) {
    %c0_i32 = arith.constant 0 : i32
    %c0_i32_0 = arith.constant 0 : i32
    return %arg0, %c0_i32 : i32, i32
  }
  func.func @transform_1(%arg0: i32) -> (i32, i32) {
    %c0_i32 = arith.constant 0 : i32
    %c0_i32_0 = arith.constant 0 : i32
    %c0_i32_1 = arith.constant 0 : i32
    return %c0_i32, %c0_i32_0 : i32, i32
  }
  func.func @transform_2(%arg0: i32) -> (i32, i32) {
    %c0_i32 = arith.constant 0 : i32
    %c0_i32_0 = arith.constant 0 : i32
    %c0_i32_1 = arith.constant 0 : i32
    return %c0_i32, %c0_i32_0 : i32, i32
  }
  func.func @transform_3(%arg0: i32) -> (i32, i32) {
    %c0_i32 = arith.constant 0 : i32
    %c0_i32_0 = arith.constant 0 : i32
    %c0_i32_1 = arith.constant 0 : i32
    return %c0_i32, %c0_i32_0 : i32, i32
  }
  func.func @transform_4(%arg0: i32) -> (i32, i32) {
    %c0_i32 = arith.constant 0 : i32
    %c0_i32_0 = arith.constant 0 : i32
    %c0_i32_1 = arith.constant 0 : i32
    return %c0_i32, %c0_i32_0 : i32, i32
  }
  func.func @transform_5(%arg0: i32) -> (i32, i32) {
    %c0_i32 = arith.constant 0 : i32
    %c0_i32_0 = arith.constant 0 : i32
    return %arg0, %c0_i32 : i32, i32
  }
}

</mosaic_0001>

<llo_original>
// kernel: tpu_custom_call.1
$region0: #{tpu_custom_call.1}
  #allocation0 [shape = 'u32[]', space=smem, size = 0x4, offset = 0x4, fixed_abs, tag = 'smem constant byte address 0x4 - core index']
  #allocation1 [shape = 'u32[144,128]{1,0:T(1,128)}', space=vmem, size = 0x12000, scoped, tag = 'internal scratch']
  %s0 = inlined_call_operand.vmem [shape: f32[50,16], index: 0, kind: input, shape index: {}]
  %s1 = inlined_call_operand.vmem [shape: bf16[16,128], index: 1, kind: input, shape index: {}]
  %s2 = inlined_call_operand.vmem [shape: bf16[128,128], index: 2, kind: input, shape index: {}]
  %s3 = inlined_call_operand.hbm [shape: bf16[128,128], index: 3, kind: input, shape index: {}]
  %s4 = inlined_call_operand.vmem [shape: f32[8,128], index: 4, kind: input, shape index: {}]
  %s5 = inlined_call_operand.hbm [shape: f32[50,128], index: 5, kind: output, shape index: {}]
  %s6 = sld [smem:[#allocation0]]
  $region57: #{tpu_custom_call.1} parent=0
    _
  %s8 = ssub.s32 1, %s6
  %s9 = scalar_select 0, %s8, %s6
  $region1: #{tpu_custom_call.1} parent=0
    #allocation2 [shape = 'u8[32768]{0}', space=vmem, size = 0x8000, scoped, tag = 'input window, operand 3, single buffered']
    #allocation3 [shape = 's32[2]{0}', space=sflag, size = 0x8, scoped, tag = 'scoped memory for tpu_custom_call.1']
    #allocation4 [shape = 's32[2]{0}', space=sflag, size = 0x8, scoped, tag = 'scoped memory for tpu_custom_call.1']
    #allocation5 [shape = 'u8[32768]{0}', space=vmem, size = 0x8000, scoped, tag = 'output window, operand 0']
    %10 = vsyncpa [#allocation3], 0
    %11 = vsyncpa [#allocation4], 0
    %s12 = scalar_lea.sflag [#allocation4], 1
    %13 = vsyncpa %s12, 0
    loop: start=0, step=1, limit=4
    $region2: #{tpu_custom_call.1} parent=1 // loop_pre_header
      _
    $region3: #{tpu_custom_call.1} parent=1 // loop_header
      %s15 = sphi 0, %s19
      %p16 = scmp.ge.s32.totalorder %s15, 4
      %s25 = sphi 0, %s27
      %s28 = sphi 0, %s25
      %s29 = sphi 0, %s28
      %s45 = sphi 0, %s29
      %s49 = sphi 0, %s49
      %s51 = sphi 0, %s49
      %s52 = sphi 0, %s51
      %s66 = sphi 0, %s52
      %s70 = sphi 0, %s70
      %s72 = sphi 0, %s70
      %s73 = sphi 0, %s72
      %s87 = sphi 0, %s73
      %s91 = sphi 0, %s91
      %s93 = sphi 0, %s91
      %s94 = sphi 0, %s93
      %s108 = sphi 0, %s94
      %s112 = sphi 0, %s112
      %s114 = sphi 0, %s112
      %s115 = sphi 0, %s114
      %s129 = sphi 0, %s115
      %s135 = sphi 0, %s137
      %s138 = sphi 0, %s135
      %s139 = sphi 0, %s138
      %s155 = sphi 0, %s139
    $region4: #{tpu_custom_call.1} parent=1 // loop_header_branch
      %18 = sbr.rel (%p16) target = $region8
    $region5: #{tpu_custom_call.1} parent=1 // loop_body
      %s20 = ssub.s32 %s15, 1
      %s21 = ssub.s32 %s15, 2
      %s22 = sadd.s32 %s15, 1
      %s23 = ssub.s32 %s15, %s22
      %p24 = scmp.eq.s32.totalorder %s23, 0
      %s26 = sadd.s32 %s25, 1
      %s27 = scalar_select %p24, %s25, %s26
      %p30 = pneg %p24
      %p31 = scmp.eq.s32.totalorder %s15, 1
      %p32 = por %p30, %p31
      %p33 = scmp.ne.s32.totalorder %s25, %s28
      %p34 = scmp.eq.s32.totalorder %s15, 0
      %p35 = por %p33, %p34
      %p36 = scmp.ne.s32.totalorder %s25, %s28
      %p37 = scmp.eq.s32.totalorder %s20, 1
      %p38 = por %p36, %p37
      %p39 = scmp.ne.s32.totalorder %s28, %s29
      %p40 = scmp.eq.s32.totalorder %s20, 0
      %p41 = por %p39, %p40
      %p42 = scmp.ne.s32.totalorder %s28, %s29
      %p43 = scmp.eq.s32.totalorder %s21, 1
      %p44 = por %p42, %p43
      %p46 = scmp.ne.s32.totalorder %s29, %s45
      %p47 = scmp.eq.s32.totalorder %s21, 0
      %p48 = por %p46, %p47
      %s50 = sadd.s32 %s49, 1
      %p53 = scmp.eq.s32.totalorder %s15, 1
      %p54 = scmp.ne.s32.totalorder %s49, %s51
      %p55 = scmp.eq.s32.totalorder %s15, 0
      %p56 = por %p54, %p55
      %p57 = scmp.ne.s32.totalorder %s49, %s51
      %p58 = scmp.eq.s32.totalorder %s20, 1
      %p59 = por %p57, %p58
      %p60 = scmp.ne.s32.totalorder %s51, %s52
      %p61 = scmp.eq.s32.totalorder %s20, 0
      %p62 = por %p60, %p61
      %p63 = scmp.ne.s32.totalorder %s51, %s52
      %p64 = scmp.eq.s32.totalorder %s21, 1
      %p65 = por %p63, %p64
      %p67 = scmp.ne.s32.totalorder %s52, %s66
      %p68 = scmp.eq.s32.totalorder %s21, 0
      %p69 = por %p67, %p68
      %s71 = sadd.s32 %s70, 1
      %p74 = scmp.eq.s32.totalorder %s15, 1
      %p75 = scmp.ne.s32.totalorder %s70, %s72
      %p76 = scmp.eq.s32.totalorder %s15, 0
      %p77 = por %p75, %p76
      %p78 = scmp.ne.s32.totalorder %s70, %s72
      %p79 = scmp.eq.s32.totalorder %s20, 1
      %p80 = por %p78, %p79
      %p81 = scmp.ne.s32.totalorder %s72, %s73
      %p82 = scmp.eq.s32.totalorder %s20, 0
      %p83 = por %p81, %p82
      %p84 = scmp.ne.s32.totalorder %s72, %s73
      %p85 = scmp.eq.s32.totalorder %s21, 1
      %p86 = por %p84, %p85
      %p88 = scmp.ne.s32.totalorder %s73, %s87
      %p89 = scmp.eq.s32.totalorder %s21, 0
      %p90 = por %p88, %p89
      %s92 = sadd.s32 %s91, 1
      %p95 = scmp.eq.s32.totalorder %s15, 1
      %p96 = scmp.ne.s32.totalorder %s91, %s93
      %p97 = scmp.eq.s32.totalorder %s15, 0
      %p98 = por %p96, %p97
      %p99 = scmp.ne.s32.totalorder %s91, %s93
      %p100 = scmp.eq.s32.totalorder %s20, 1
      %p101 = por %p99, %p100
      %p102 = scmp.ne.s32.totalorder %s93, %s94
      %p103 = scmp.eq.s32.totalorder %s20, 0
      %p104 = por %p102, %p103
      %p105 = scmp.ne.s32.totalorder %s93, %s94
      %p106 = scmp.eq.s32.totalorder %s21, 1
      %p107 = por %p105, %p106
      %p109 = scmp.ne.s32.totalorder %s94, %s108
      %p110 = scmp.eq.s32.totalorder %s21, 0
      %p111 = por %p109, %p110
      %s113 = sadd.s32 %s112, 1
      %p116 = scmp.eq.s32.totalorder %s15, 1
      %p117 = scmp.ne.s32.totalorder %s112, %s114
      %p118 = scmp.eq.s32.totalorder %s15, 0
      %p119 = por %p117, %p118
      %p120 = scmp.ne.s32.totalorder %s112, %s114
      %p121 = scmp.eq.s32.totalorder %s20, 1
      %p122 = por %p120, %p121
      %p123 = scmp.ne.s32.totalorder %s114, %s115
      %p124 = scmp.eq.s32.totalorder %s20, 0
      %p125 = por %p123, %p124
      %p126 = scmp.ne.s32.totalorder %s114, %s115
      %p127 = scmp.eq.s32.totalorder %s21, 1
      %p128 = por %p126, %p127
      %p130 = scmp.ne.s32.totalorder %s115, %s129
      %p131 = scmp.eq.s32.totalorder %s21, 0
      %p132 = por %p130, %p131
      %s133 = ssub.s32 %s15, %s22
      %p134 = scmp.eq.s32.totalorder %s133, 0
      %s136 = sadd.s32 %s135, 1
      %s137 = scalar_select %p134, %s135, %s136
      %p140 = pneg %p134
      %p141 = scmp.eq.s32.totalorder %s15, 1
      %p142 = por %p140, %p141
      %p143 = scmp.ne.s32.totalorder %s135, %s138
      %p144 = scmp.eq.s32.totalorder %s15, 0
      %p145 = por %p143, %p144
      %p146 = scmp.ne.s32.totalorder %s135, %s138
      %p147 = scmp.eq.s32.totalorder %s20, 1
      %p148 = por %p146, %p147
      %p149 = scmp.ne.s32.totalorder %s138, %s139
      %p150 = scmp.eq.s32.totalorder %s20, 0
      %p151 = por %p149, %p150
      %p152 = scmp.ne.s32.totalorder %s138, %s139
      %p153 = scmp.eq.s32.totalorder %s21, 1
      %p154 = por %p152, %p153
      %p156 = scmp.ne.s32.totalorder %s139, %s155
      %p157 = scmp.eq.s32.totalorder %s21, 0
      %p158 = por %p156, %p157
      %p159 = scmp.le.s32.totalorder 1, %s15
      %p160 = scmp.lt.s32.totalorder %s15, 3
      %p161 = pnand %p159, %p160
      %p162 = pneg %p161
      // Predicated region
      $region9: #{tpu_custom_call.1} parent=5 // pred_check
        _
      $region10: #{tpu_custom_call.1} parent=5 // pred_check_branch
        %164 = sbr.rel (%p161) target = $region12
      $region11: #{tpu_custom_call.1} parent=5 // pred_region
        %s165 = ssub.s32 %s15, 1
        // Predicated region
        $region13: #{tpu_custom_call.1} parent=11 // pred_check
          %p166 = pneg %p62
        $region14: #{tpu_custom_call.1} parent=11 // pred_check_branch
          %168 = sbr.rel (%p166) target = $region16
        $region15: #{tpu_custom_call.1} parent=11 // pred_region
          _
        $region16: #{tpu_custom_call.1} parent=11 // pred_fallthru
          _
        // Predicated region
        $region17: #{tpu_custom_call.1} parent=11 // pred_check
          %p169 = pneg %p83
        $region18: #{tpu_custom_call.1} parent=11 // pred_check_branch
          %171 = sbr.rel (%p169) target = $region20
        $region19: #{tpu_custom_call.1} parent=11 // pred_region
          _
        $region20: #{tpu_custom_call.1} parent=11 // pred_fallthru
          _
        // Predicated region
        $region21: #{tpu_custom_call.1} parent=11 // pred_check
          %p172 = pneg %p104
        $region22: #{tpu_custom_call.1} parent=11 // pred_check_branch
          %174 = sbr.rel (%p172) target = $region24
        $region23: #{tpu_custom_call.1} parent=11 // pred_region
          %s176 = ssub.s32 1024, 1024
          %177 = vsyncadd [#allocation3], %s176
          %s178 = sshll.u32 [#allocation2], 4
          %s179 = int_to_ptr.vmem [resolvable:$true] %s178
          %184 = dma.hbm_to_vmem [thread:$0]  %s3, 1024, %s179, [#allocation3], 64, 64, 4
        $region24: #{tpu_custom_call.1} parent=11 // pred_fallthru
          _
        // Predicated region
        $region25: #{tpu_custom_call.1} parent=11 // pred_check
          %p185 = pneg %p125
        $region26: #{tpu_custom_call.1} parent=11 // pred_check_branch
          %187 = sbr.rel (%p185) target = $region28
        $region27: #{tpu_custom_call.1} parent=11 // pred_region
          _
        $region28: #{tpu_custom_call.1} parent=11 // pred_fallthru
          _
      $region12: #{tpu_custom_call.1} parent=5 // pred_fallthru
        _
      %p188 = scmp.lt.s32.totalorder %s15, 2
      // Predicated region
      $region29: #{tpu_custom_call.1} parent=5 // pred_check
        %p189 = pneg %p188
      $region30: #{tpu_custom_call.1} parent=5 // pred_check_branch
        %191 = sbr.rel (%p189) target = $region32
      $region31: #{tpu_custom_call.1} parent=5 // pred_region
        // Predicated region
        $region33: #{tpu_custom_call.1} parent=31 // pred_check
          %p192 = pneg %p35
        $region34: #{tpu_custom_call.1} parent=31 // pred_check_branch
          %194 = sbr.rel (%p192) target = $region36
        $region35: #{tpu_custom_call.1} parent=31 // pred_region
          %s195 = smul.u32 4, %s15
          %s196 = ssub.s32 7, %s195
          %p197 = scmp.lt.s32.totalorder %s196, 4
          %s198 = scalar_select %p197, %s196, 4
          %s199 = smul.u32 128, %s198
          %p200 = scmp.lt.s32.totalorder %s195, 6
          %s201 = scalar_select %p200, %s195, 6
          %s202 = smul.addr %s201, 8
          %s203 = scalar_lea.vmem %s0, %s202
          %s204 = smul.u32 4, %s15
          %s205 = ssub.s32 7, %s204
          %p206 = scmp.lt.s32.totalorder %s205, 4
          %s207 = scalar_select %p206, %s205, 4
          %s208 = smul.u32 128, %s207
        $region36: #{tpu_custom_call.1} parent=31 // pred_fallthru
          _
      $region32: #{tpu_custom_call.1} parent=5 // pred_fallthru
        _
      %p209 = scmp.le.s32.totalorder 1, %s15
      %p210 = scmp.lt.s32.totalorder %s15, 3
      %p211 = pnand %p209, %p210
      %p212 = pneg %p211
      // Predicated region
      $region37: #{tpu_custom_call.1} parent=5 // pred_check
        _
      $region38: #{tpu_custom_call.1} parent=5 // pred_check_branch
        %214 = sbr.rel (%p211) target = $region40
      $region39: #{tpu_custom_call.1} parent=5 // pred_region
        %s215 = ssub.s32 %s15, 1
        // Predicated region
        $region41: #{tpu_custom_call.1} parent=39 // pred_check
          %p216 = pneg %p104
        $region42: #{tpu_custom_call.1} parent=39 // pred_check_branch
          %218 = sbr.rel (%p216) target = $region44
        $region43: #{tpu_custom_call.1} parent=39 // pred_region
          %219 = dma.done [#allocation3], 1024
        $region44: #{tpu_custom_call.1} parent=39 // pred_fallthru
          _
        %s220 = smul.u32 4, %s20
        %s221 = ssub.s32 7, %s220
        %p222 = scmp.lt.s32.totalorder %s221, 4
        %s223 = scalar_select %p222, %s221, 4
        %s224 = smul.u32 128, %s223
        %p225 = scmp.lt.s32.totalorder %s220, 6
        %s226 = scalar_select %p225, %s220, 6
        %s227 = smul.addr %s226, 8
        %s228 = scalar_lea.vmem %s0, %s227
        %p229 = pneg %p41
        %p230 = pneg %p38
        %p231 = pneg %p62
        %p232 = pneg %p59
        %p233 = pneg %p83
        %p234 = pneg %p80
        %p235 = pneg %p104
        %p236 = pneg %p101
        %p237 = pneg %p125
        %p238 = pneg %p122
        %p239 = pneg %p151
        %p240 = pneg %p148
        %s241 = sand.u32 %s138, 1
        %s242 = scalar_lea.sflag [#allocation4], %s241
        %s243 = sand.u32 %s138, 1
        %s244 = smul.addr %s243, 32
        %s245 = scalar_lea.vmem [#allocation5], %s244
        %s246 = smul.u32 4, %s20
        %s247 = ssub.s32 7, %s246
        %p248 = scmp.lt.s32.totalorder %s247, 4
        %s249 = scalar_select %p248, %s247, 4
        %s250 = smul.u32 128, %s249
        %p251 = scmp.lt.s32.totalorder %s246, 6
        %s252 = scalar_select %p251, %s246, 6
        %s253 = smul.addr %s252, 8
        %s254 = scalar_lea.vmem %s0, %s253
        %s255 = smul.u32 4, %s20
        %s256 = ssub.s32 7, %s255
        %p257 = scmp.lt.s32.totalorder %s256, 4
        %s258 = scalar_select %p257, %s256, 4
        %s259 = smul.u32 128, %s258
        %s260 = smul.u32 4, %s20
        %s261 = ssub.s32 7, %s260
        %p262 = scmp.lt.s32.totalorder %s261, 4
        %s263 = scalar_select %p262, %s261, 4
        %s264 = smul.u32 128, %s263
        %v266 = vld [vmem:[%s4] sm:$0x1]
        %v267 = vld [vmem:[%s4 + $0x1] sm:$0x1]
        %v268 = vld [vmem:[%s4 + $0x2] sm:$0x1]
        %v269 = vld [vmem:[%s254] sm:$0xff]
        %v270 = vld [vmem:[%s254 + $0x8] sm:$0xff]
        %v271 = vld [vmem:[%s254 + $0x10] sm:$0xff]
        %v272 = vld [vmem:[%s254 + $0x18] sm:$0xff]
        %v273 = vpack.c.bf16 %v270, %v269
        %v274 = vpack.c.bf16 %v272, %v271
        %v275 = vld [vmem:[%s1] sm:$0xf]
        %v276 = vld [vmem:[%s1 + $0x4] sm:$0xf]
        %v277 = vlaneseq
        %v278 = vshrl.u32 %v277, 7
        %v279 = vsub.s32 0, %v278
        %v280 = vrot.slane %v266, %v279
        %v283 = vunpack.c.l.b16 %v275
        %v284 = vunpack.c.l.b16 %v276
        %v285 = vpack.c.b16 %v284, %v283
        %vm287 = vcmask 130048
        %v289 = vsel %vm287, %v273, 0
        %v292 = vsel %vm287, %v274, 0
        %294 = vmatprep.subr.bf16.mxu0 0
        %295 = vmatpush1.bf16.msra.mxu0 %v285
        %296 = vmatprep.subr.bf16.mxu0 0
        %297 = vmatpush1.bf16.msra.mxu0 0
        %298 = vmatprep.subr.bf16.mxu0 0
        %299 = vmatpush1.bf16.msra.mxu0 0
        %300 = vmatprep.subr.bf16.mxu0 0
        %301 = vmatpush1.bf16.msra.mxu0 0
        %302 = vmatprep.subr.bf16.mxu0 0
        %303 = vmatpush1.bf16.msra.mxu0 0
        %304 = vmatprep.subr.bf16.mxu0 0
        %305 = vmatpush1.bf16.msra.mxu0 0
        %306 = vmatprep.subr.bf16.mxu0 0
        %307 = vmatpush1.bf16.msra.mxu0 0
        %308 = vmatprep.subr.bf16.mxu0 0
        %309 = vmatpush1.bf16.msra.mxu0 0
        %310 = vmatprep.subr.bf16.mxu0 0
        %311 = vmatpush1.bf16.msra.mxu0 0
        %312 = vmatprep.subr.bf16.mxu0 0
        %313 = vmatpush1.bf16.msra.mxu0 0
        %314 = vmatprep.subr.bf16.mxu0 0
        %315 = vmatpush1.bf16.msra.mxu0 0
        %316 = vmatprep.subr.bf16.mxu0 0
        %317 = vmatpush1.bf16.msra.mxu0 0
        %318 = vmatprep.subr.bf16.mxu0 0
        %319 = vmatpush1.bf16.msra.mxu0 0
        %320 = vmatprep.subr.bf16.mxu0 0
        %321 = vmatpush1.bf16.msra.mxu0 0
        %322 = vmatprep.subr.bf16.mxu0 0
        %323 = vmatpush1.bf16.msra.mxu0 0
        %324 = vmatprep.subr.bf16.mxu0 0
        %325 = vmatpush1.bf16.msra.mxu0 0
        %326 = vmatprep.mubr.bf16.mxu0 0
        %327 = vmatmul.mubr.bf16.gmra.mrb[0].mxu0 %v289
        %v328 = vpop.f32.mrb[0].mxu0
        %v329 = vadd.f32 %v280, %v328
        %v330 = vpop.f32.mrb[0].mxu0
        %v331 = vpop.f32.mrb[0].mxu0
        %v332 = vadd.f32 %v280, %v331
        %v333 = vpop.f32.mrb[0].mxu0
        %334 = vmatprep.mubr.bf16.mxu0 0
        %335 = vmatmul.mubr.bf16.gmra.mrb[0].mxu0 %v292
        %v336 = vpop.f32.mrb[0].mxu0
        %v337 = vadd.f32 %v280, %v336
        %v338 = vpop.f32.mrb[0].mxu0
        %v339 = vpop.f32.mrb[0].mxu0
        %v340 = vadd.f32 %v280, %v339
        %v341 = vpop.f32.mrb[0].mxu0
        %342 = vdwg.mxu0
        %v343 = vmax.f32 %v329, 0.0
        %v344 = vmax.f32 %v332, 0.0
        %v345 = vmax.f32 %v337, 0.0
        %v346 = vmax.f32 %v340, 0.0
        %v347 = vpack.c.bf16 %v344, %v343
        %v348 = vpack.c.bf16 %v346, %v345
        %v349 = vld [vmem:[%s2] sm:$0xf]
        %v350 = vld [vmem:[%s2 + $0x4] sm:$0xf]
        %v351 = vld [vmem:[%s2 + $0x8] sm:$0xf]
        %v352 = vld [vmem:[%s2 + $0xc] sm:$0xf]
        %v353 = vld [vmem:[%s2 + $0x10] sm:$0xf]
        %v354 = vld [vmem:[%s2 + $0x14] sm:$0xf]
        %v355 = vld [vmem:[%s2 + $0x18] sm:$0xf]
        %v356 = vld [vmem:[%s2 + $0x1c] sm:$0xf]
        %v357 = vld [vmem:[%s2 + $0x20] sm:$0xf]
        %v358 = vld [vmem:[%s2 + $0x24] sm:$0xf]
        %v359 = vld [vmem:[%s2 + $0x28] sm:$0xf]
        %v360 = vld [vmem:[%s2 + $0x2c] sm:$0xf]
        %v361 = vld [vmem:[%s2 + $0x30] sm:$0xf]
        %v362 = vld [vmem:[%s2 + $0x34] sm:$0xf]
        %v363 = vld [vmem:[%s2 + $0x38] sm:$0xf]
        %v364 = vld [vmem:[%s2 + $0x3c] sm:$0xf]
        %v365 = vlaneseq
        %v366 = vshrl.u32 %v365, 7
        %v367 = vsub.s32 0, %v366
        %v368 = vrot.slane %v267, %v367
        %v385 = vunpack.c.l.b16 %v349
        %v386 = vunpack.c.l.b16 %v350
        %v387 = vunpack.c.l.b16 %v351
        %v388 = vunpack.c.l.b16 %v352
        %v389 = vunpack.c.l.b16 %v353
        %v390 = vunpack.c.l.b16 %v354
        %v391 = vunpack.c.l.b16 %v355
        %v392 = vunpack.c.l.b16 %v356
        %v393 = vunpack.c.l.b16 %v357
        %v394 = vunpack.c.l.b16 %v358
        %v395 = vunpack.c.l.b16 %v359
        %v396 = vunpack.c.l.b16 %v360
        %v397 = vunpack.c.l.b16 %v361
        %v398 = vunpack.c.l.b16 %v362
        %v399 = vunpack.c.l.b16 %v363
        %v400 = vunpack.c.l.b16 %v364
        %v401 = vpack.c.b16 %v386, %v385
        %v402 = vpack.c.b16 %v388, %v387
        %v403 = vpack.c.b16 %v390, %v389
        %v404 = vpack.c.b16 %v392, %v391
        %v405 = vpack.c.b16 %v394, %v393
        %v406 = vpack.c.b16 %v396, %v395
        %v407 = vpack.c.b16 %v398, %v397
        %v408 = vpack.c.b16 %v400, %v399
        %417 = vmatprep.subr.bf16.mxu0 0
        %418 = vmatpush1.bf16.msra.mxu0 %v401
        %419 = vmatprep.subr.bf16.mxu0 0
        %420 = vmatpush1.bf16.msra.mxu0 %v402
        %421 = vmatprep.subr.bf16.mxu0 0
        %422 = vmatpush1.bf16.msra.mxu0 %v403
        %423 = vmatprep.subr.bf16.mxu0 0
        %424 = vmatpush1.bf16.msra.mxu0 %v404
        %425 = vmatprep.subr.bf16.mxu0 0
        %426 = vmatpush1.bf16.msra.mxu0 %v405
        %427 = vmatprep.subr.bf16.mxu0 0
        %428 = vmatpush1.bf16.msra.mxu0 %v406
        %429 = vmatprep.subr.bf16.mxu0 0
        %430 = vmatpush1.bf16.msra.mxu0 %v407
        %431 = vmatprep.subr.bf16.mxu0 0
        %432 = vmatpush1.bf16.msra.mxu0 %v408
        %433 = vmatprep.subr.bf16.mxu0 0
        %434 = vmatpush1.bf16.msra.mxu0 0
        %435 = vmatprep.subr.bf16.mxu0 0
        %436 = vmatpush1.bf16.msra.mxu0 0
        %437 = vmatprep.subr.bf16.mxu0 0
        %438 = vmatpush1.bf16.msra.mxu0 0
        %439 = vmatprep.subr.bf16.mxu0 0
        %440 = vmatpush1.bf16.msra.mxu0 0
        %441 = vmatprep.subr.bf16.mxu0 0
        %442 = vmatpush1.bf16.msra.mxu0 0
        %443 = vmatprep.subr.bf16.mxu0 0
        %444 = vmatpush1.bf16.msra.mxu0 0
        %445 = vmatprep.subr.bf16.mxu0 0
        %446 = vmatpush1.bf16.msra.mxu0 0
        %447 = vmatprep.subr.bf16.mxu0 0
        %448 = vmatpush1.bf16.msra.mxu0 0
        %449 = vmatprep.mubr.bf16.mxu0 0
        %450 = vmatmul.mubr.bf16.gmra.mrb[0].mxu0 %v347
        %v451 = vpop.f32.mrb[0].mxu0
        %v452 = vadd.f32 %v368, %v451
        %v453 = vpop.f32.mrb[0].mxu0
        %v454 = vpop.f32.mrb[0].mxu0
        %v455 = vadd.f32 %v368, %v454
        %v456 = vpop.f32.mrb[0].mxu0
        %457 = vmatprep.mubr.bf16.mxu0 0
        %458 = vmatmul.mubr.bf16.gmra.mrb[0].mxu0 %v348
        %v459 = vpop.f32.mrb[0].mxu0
        %v460 = vadd.f32 %v368, %v459
        %v461 = vpop.f32.mrb[0].mxu0
        %v462 = vpop.f32.mrb[0].mxu0
        %v463 = vadd.f32 %v368, %v462
        %v464 = vpop.f32.mrb[0].mxu0
        %465 = vdwg.mxu0
        %v466 = vmax.f32 %v452, 0.0
        %v467 = vmax.f32 %v455, 0.0
        %v468 = vmax.f32 %v460, 0.0
        %v469 = vmax.f32 %v463, 0.0
        %v470 = vpack.c.bf16 %v467, %v466
        %v471 = vpack.c.bf16 %v469, %v468
        %v472 = vld [vmem:[#allocation2] sm:$0xf]
        %v473 = vld [vmem:[#allocation2 + $0x4] sm:$0xf]
        %v474 = vld [vmem:[#allocation2 + $0x8] sm:$0xf]
        %v475 = vld [vmem:[#allocation2 + $0xc] sm:$0xf]
        %v476 = vld [vmem:[#allocation2 + $0x10] sm:$0xf]
        %v477 = vld [vmem:[#allocation2 + $0x14] sm:$0xf]
        %v478 = vld [vmem:[#allocation2 + $0x18] sm:$0xf]
        %v479 = vld [vmem:[#allocation2 + $0x1c] sm:$0xf]
        %v480 = vld [vmem:[#allocation2 + $0x20] sm:$0xf]
        %v481 = vld [vmem:[#allocation2 + $0x24] sm:$0xf]
        %v482 = vld [vmem:[#allocation2 + $0x28] sm:$0xf]
        %v483 = vld [vmem:[#allocation2 + $0x2c] sm:$0xf]
        %v484 = vld [vmem:[#allocation2 + $0x30] sm:$0xf]
        %v485 = vld [vmem:[#allocation2 + $0x34] sm:$0xf]
        %v486 = vld [vmem:[#allocation2 + $0x38] sm:$0xf]
        %v487 = vld [vmem:[#allocation2 + $0x3c] sm:$0xf]
        %v488 = vlaneseq
        %v489 = vshrl.u32 %v488, 7
        %v490 = vsub.s32 0, %v489
        %v491 = vrot.slane %v268, %v490
        %v508 = vunpack.c.l.b16 %v472
        %v509 = vunpack.c.l.b16 %v473
        %v510 = vunpack.c.l.b16 %v474
        %v511 = vunpack.c.l.b16 %v475
        %v512 = vunpack.c.l.b16 %v476
        %v513 = vunpack.c.l.b16 %v477
        %v514 = vunpack.c.l.b16 %v478
        %v515 = vunpack.c.l.b16 %v479
        %v516 = vunpack.c.l.b16 %v480
        %v517 = vunpack.c.l.b16 %v481
        %v518 = vunpack.c.l.b16 %v482
        %v519 = vunpack.c.l.b16 %v483
        %v520 = vunpack.c.l.b16 %v484
        %v521 = vunpack.c.l.b16 %v485
        %v522 = vunpack.c.l.b16 %v486
        %v523 = vunpack.c.l.b16 %v487
        %v524 = vpack.c.b16 %v509, %v508
        %v525 = vpack.c.b16 %v511, %v510
        %v526 = vpack.c.b16 %v513, %v512
        %v527 = vpack.c.b16 %v515, %v514
        %v528 = vpack.c.b16 %v517, %v516
        %v529 = vpack.c.b16 %v519, %v518
        %v530 = vpack.c.b16 %v521, %v520
        %v531 = vpack.c.b16 %v523, %v522
        %540 = vmatprep.subr.bf16.mxu0 0
        %541 = vmatpush1.bf16.msra.mxu0 %v524
        %542 = vmatprep.subr.bf16.mxu0 0
        %543 = vmatpush1.bf16.msra.mxu0 %v525
        %544 = vmatprep.subr.bf16.mxu0 0
        %545 = vmatpush1.bf16.msra.mxu0 %v526
        %546 = vmatprep.subr.bf16.mxu0 0
        %547 = vmatpush1.bf16.msra.mxu0 %v527
        %548 = vmatprep.subr.bf16.mxu0 0
        %549 = vmatpush1.bf16.msra.mxu0 %v528
        %550 = vmatprep.subr.bf16.mxu0 0
        %551 = vmatpush1.bf16.msra.mxu0 %v529
        %552 = vmatprep.subr.bf16.mxu0 0
        %553 = vmatpush1.bf16.msra.mxu0 %v530
        %554 = vmatprep.subr.bf16.mxu0 0
        %555 = vmatpush1.bf16.msra.mxu0 %v531
        %556 = vmatprep.subr.bf16.mxu0 0
        %557 = vmatpush1.bf16.msra.mxu0 0
        %558 = vmatprep.subr.bf16.mxu0 0
        %559 = vmatpush1.bf16.msra.mxu0 0
        %560 = vmatprep.subr.bf16.mxu0 0
        %561 = vmatpush1.bf16.msra.mxu0 0
        %562 = vmatprep.subr.bf16.mxu0 0
        %563 = vmatpush1.bf16.msra.mxu0 0
        %564 = vmatprep.subr.bf16.mxu0 0
        %565 = vmatpush1.bf16.msra.mxu0 0
        %566 = vmatprep.subr.bf16.mxu0 0
        %567 = vmatpush1.bf16.msra.mxu0 0
        %568 = vmatprep.subr.bf16.mxu0 0
        %569 = vmatpush1.bf16.msra.mxu0 0
        %570 = vmatprep.subr.bf16.mxu0 0
        %571 = vmatpush1.bf16.msra.mxu0 0
        %572 = vmatprep.mubr.bf16.mxu0 0
        %573 = vmatmul.mubr.bf16.gmra.mrb[0].mxu0 %v470
        %v574 = vpop.f32.mrb[0].mxu0
        %v575 = vadd.f32 %v491, %v574
        %v576 = vpop.f32.mrb[0].mxu0
        %v577 = vpop.f32.mrb[0].mxu0
        %v578 = vadd.f32 %v491, %v577
        %v579 = vpop.f32.mrb[0].mxu0
        %580 = vmatprep.mubr.bf16.mxu0 0
        %581 = vmatmul.mubr.bf16.gmra.mrb[0].mxu0 %v471
        %v582 = vpop.f32.mrb[0].mxu0
        %v583 = vadd.f32 %v491, %v582
        %v584 = vpop.f32.mrb[0].mxu0
        %v585 = vpop.f32.mrb[0].mxu0
        %v586 = vadd.f32 %v491, %v585
        %v587 = vpop.f32.mrb[0].mxu0
        %588 = vdwg.mxu0
        %589 = vmax.xlane.f32.xlu0 %v575
        %v590 = vpop.xlane.xlu0 %589
        %591 = vmax.xlane.f32.xlu0 %v578
        %v592 = vpop.xlane.xlu0 %591
        %593 = vmax.xlane.f32.xlu0 %v583
        %v594 = vpop.xlane.xlu0 %593
        %595 = vmax.xlane.f32.xlu0 %v586
        %v596 = vpop.xlane.xlu0 %595
        %v597 = vsub.f32 %v575, %v590
        %v598 = vsub.f32 %v578, %v592
        %v599 = vsub.f32 %v583, %v594
        %v600 = vsub.f32 %v586, %v596
        %v601 = vmul.f32 %v597, 1.442695
        %v602 = vpow.pop %v601
        %v603 = vmul.f32 %v598, 1.442695
        %v604 = vpow.pop %v603
        %v605 = vmul.f32 %v599, 1.442695
        %v606 = vpow.pop %v605
        %v607 = vmul.f32 %v600, 1.442695
        %v608 = vpow.pop %v607
        %609 = vadd.xlane.f32.xlu0 %v602
        %v610 = vpop.xlane.xlu0 %609
        %611 = vadd.xlane.f32.xlu0 %v604
        %v612 = vpop.xlane.xlu0 %611
        %613 = vadd.xlane.f32.xlu0 %v606
        %v614 = vpop.xlane.xlu0 %613
        %615 = vadd.xlane.f32.xlu0 %v608
        %v616 = vpop.xlane.xlu0 %615
        %v617 = vrcp.pop %v610
        %v618 = vmul.f32 %v602, %v617
        %v619 = vrcp.pop %v612
        %v620 = vmul.f32 %v604, %v619
        %v621 = vrcp.pop %v614
        %v622 = vmul.f32 %v606, %v621
        %v623 = vrcp.pop %v616
        %v624 = vmul.f32 %v608, %v623
        %625 = vst [vmem:[%s245] sm:$0xff] %v618
        %626 = vst [vmem:[%s245 + $0x8] sm:$0xff] %v620
        %627 = vst [vmem:[%s245 + $0x10] sm:$0xff] %v622
        %628 = vst [vmem:[%s245 + $0x18] sm:$0xff] %v624
        %s629 = sand.u32 %s138, 1
        %s630 = scalar_lea.sflag [#allocation4], %s629
        %s631 = sand.u32 %s138, 1
        %s632 = smul.addr %s631, 32
        %s633 = scalar_lea.vmem [#allocation5], %s632
        // Predicated region
        $region45: #{tpu_custom_call.1} parent=39 // pred_check
          %p634 = pneg %p148
        $region46: #{tpu_custom_call.1} parent=39 // pred_check_branch
          %636 = sbr.rel (%p634) target = $region48
        $region47: #{tpu_custom_call.1} parent=39 // pred_region
          %s637 = smul.u32 4, %s20
          %s638 = ssub.s32 7, %s637
          %p639 = scmp.lt.s32.totalorder %s638, 4
          %s640 = scalar_select %p639, %s638, 4
          %s641 = smul.u32 128, %s640
          %s643 = ssub.s32 512, %s641
          %644 = vsyncadd %s630, %s643
          %p645 = scmp.ne.s32.totalorder 0, %s641
          %s646 = smul.addr %s637, 128
          %s647 = scalar_lea.hbm %s5, %s646
          %s648 = smul.u32 8, %s640
          %s649 = sshll.u32 %s633, 4
          %s650 = int_to_ptr.vmem [resolvable:$true] %s649
          %s651 = sshll.u32 %s648, 4
          %655 = dma.vmem_to_hbm [thread:$0]  (%p645), %s650, %s651, %s647, %s630, 128, 128, 8
        $region48: #{tpu_custom_call.1} parent=39 // pred_fallthru
          _
      $region40: #{tpu_custom_call.1} parent=5 // pred_fallthru
        _
      %p656 = scmp.le.s32.totalorder 2, %s15
      // Predicated region
      $region49: #{tpu_custom_call.1} parent=5 // pred_check
        %p657 = pneg %p656
      $region50: #{tpu_custom_call.1} parent=5 // pred_check_branch
        %659 = sbr.rel (%p657) target = $region52
      $region51: #{tpu_custom_call.1} parent=5 // pred_region
        %s660 = ssub.s32 %s15, 2
        // Predicated region
        $region53: #{tpu_custom_call.1} parent=51 // pred_check
          %p661 = pneg %p154
        $region54: #{tpu_custom_call.1} parent=51 // pred_check_branch
          %663 = sbr.rel (%p661) target = $region56
        $region55: #{tpu_custom_call.1} parent=51 // pred_region
          %s664 = sand.u32 %s139, 1
          %s665 = scalar_lea.sflag [#allocation4], %s664
          %s666 = sand.u32 %s139, 1
          %s667 = smul.addr %s666, 32
          %s668 = scalar_lea.vmem [#allocation5], %s667
          %669 = dma.done %s665, 512
        $region56: #{tpu_custom_call.1} parent=51 // pred_fallthru
          _
      $region52: #{tpu_custom_call.1} parent=5 // pred_fallthru
        _
    $region6: #{tpu_custom_call.1} parent=1 // loop_footer
      %s19 = sadd.s32 1, %s15
    $region7: #{tpu_custom_call.1} parent=1 // loop_footer_branch
      %14 = sbr.rel target = $region3
    $region8: #{tpu_custom_call.1} parent=1 // loop_exit
      _
    %670 = vsyncpa [#allocation3], 1
    %s671 = scalar_lea.sflag [#allocation3], 1
    %672 = vsyncpa %s671, 1
    %673 = vsyncpa [#allocation4], 1
    %s674 = scalar_lea.sflag [#allocation4], 1
    %675 = vsyncpa %s674, 1

// kernel: tpu_custom_call.1
$region0: #{tpu_custom_call.1}
  #allocation0 [shape = 'u32[]', space=smem, size = 0x4, offset = 0x4, fixed_abs, tag = 'smem constant byte address 0x4 - core index']
  #allocation1 [shape = 'u32[144,128]{1,0:T(1,128)}', space=vmem, size = 0x12000, scoped, tag = 'internal scratch']
  %s0 = inlined_call_operand.vmem [shape: f32[50,16], index: 0, kind: input, shape index: {}]
  %s1 = inlined_call_operand.vmem [shape: bf16[16,128], index: 1, kind: input, shape index: {}]
  %s2 = inlined_call_operand.vmem [shape: bf16[128,128], index: 2, kind: input, shape index: {}]
  %s3 = inlined_call_operand.hbm [shape: bf16[128,128], index: 3, kind: input, shape index: {}]
  %s4 = inlined_call_operand.vmem [shape: f32[8,128], index: 4, kind: input, shape index: {}]
  %s5 = inlined_call_operand.hbm [shape: f32[50,128], index: 5, kind: output, shape index: {}]
  %s6 = sld [smem:[#allocation0]]
  $region57: #{tpu_custom_call.1} parent=0
    _
  %s8 = ssub.s32 1, %s6
  %s9 = scalar_select 0, %s8, %s6
  $region1: #{tpu_custom_call.1} parent=0
    #allocation2 [shape = 'u8[32768]{0}', space=vmem, size = 0x8000, scoped, tag = 'input window, operand 3, single buffered']
    #allocation3 [shape = 's32[2]{0}', space=sflag, size = 0x8, scoped, tag = 'scoped memory for tpu_custom_call.1']
    #allocation4 [shape = 's32[2]{0}', space=sflag, size = 0x8, scoped, tag = 'scoped memory for tpu_custom_call.1']
    #allocation5 [shape = 'u8[32768]{0}', space=vmem, size = 0x8000, scoped, tag = 'output window, operand 0']
    %10 = vsyncpa [#allocation3], 0
    %11 = vsyncpa [#allocation4], 0
    %s12 = scalar_lea.sflag [#allocation4], 1
    %13 = vsyncpa %s12, 0
    loop: start=0, step=1, limit=4
    $region2: #{tpu_custom_call.1} parent=1 // loop_pre_header
      _
    $region3: #{tpu_custom_call.1} parent=1 // loop_header
      %s15 = sphi 0, %s19
      %p16 = scmp.ge.s32.totalorder %s15, 4
      %s25 = sphi 0, %s27
      %s28 = sphi 0, %s25
      %s29 = sphi 0, %s28
      %s45 = sphi 0, %s29
      %s49 = sphi 0, %s49
      %s51 = sphi 0, %s49
      %s52 = sphi 0, %s51
      %s66 = sphi 0, %s52
      %s70 = sphi 0, %s70
      %s72 = sphi 0, %s70
      %s73 = sphi 0, %s72
      %s87 = sphi 0, %s73
      %s91 = sphi 0, %s91
      %s93 = sphi 0, %s91
      %s94 = sphi 0, %s93
      %s108 = sphi 0, %s94
      %s112 = sphi 0, %s112
      %s114 = sphi 0, %s112
      %s115 = sphi 0, %s114
      %s129 = sphi 0, %s115
      %s135 = sphi 0, %s137
      %s138 = sphi 0, %s135
      %s139 = sphi 0, %s138
      %s155 = sphi 0, %s139
    $region4: #{tpu_custom_call.1} parent=1 // loop_header_branch
      %18 = sbr.rel (%p16) target = $region8
    $region5: #{tpu_custom_call.1} parent=1 // loop_body
      %s20 = ssub.s32 %s15, 1
      %s21 = ssub.s32 %s15, 2
      %s22 = sadd.s32 %s15, 1
      %s23 = ssub.s32 %s15, %s22
      %p24 = scmp.eq.s32.totalorder %s23, 0
      %s26 = sadd.s32 %s25, 1
      %s27 = scalar_select %p24, %s25, %s26
      %p30 = pneg %p24
      %p31 = scmp.eq.s32.totalorder %s15, 1
      %p32 = por %p30, %p31
      %p33 = scmp.ne.s32.totalorder %s25, %s28
      %p34 = scmp.eq.s32.totalorder %s15, 0
      %p35 = por %p33, %p34
      %p36 = scmp.ne.s32.totalorder %s25, %s28
      %p37 = scmp.eq.s32.totalorder %s20, 1
      %p38 = por %p36, %p37
      %p39 = scmp.ne.s32.totalorder %s28, %s29
      %p40 = scmp.eq.s32.totalorder %s20, 0
      %p41 = por %p39, %p40
      %p42 = scmp.ne.s32.totalorder %s28, %s29
      %p43 = scmp.eq.s32.totalorder %s21, 1
      %p44 = por %p42, %p43
      %p46 = scmp.ne.s32.totalorder %s29, %s45
      %p47 = scmp.eq.s32.totalorder %s21, 0
      %p48 = por %p46, %p47
      %s50 = sadd.s32 %s49, 1
      %p53 = scmp.eq.s32.totalorder %s15, 1
      %p54 = scmp.ne.s32.totalorder %s49, %s51
      %p55 = scmp.eq.s32.totalorder %s15, 0
      %p56 = por %p54, %p55
      %p57 = scmp.ne.s32.totalorder %s49, %s51
      %p58 = scmp.eq.s32.totalorder %s20, 1
      %p59 = por %p57, %p58
      %p60 = scmp.ne.s32.totalorder %s51, %s52
      %p61 = scmp.eq.s32.totalorder %s20, 0
      %p62 = por %p60, %p61
      %p63 = scmp.ne.s32.totalorder %s51, %s52
      %p64 = scmp.eq.s32.totalorder %s21, 1
      %p65 = por %p63, %p64
      %p67 = scmp.ne.s32.totalorder %s52, %s66
      %p68 = scmp.eq.s32.totalorder %s21, 0
      %p69 = por %p67, %p68
      %s71 = sadd.s32 %s70, 1
      %p74 = scmp.eq.s32.totalorder %s15, 1
      %p75 = scmp.ne.s32.totalorder %s70, %s72
      %p76 = scmp.eq.s32.totalorder %s15, 0
      %p77 = por %p75, %p76
      %p78 = scmp.ne.s32.totalorder %s70, %s72
      %p79 = scmp.eq.s32.totalorder %s20, 1
      %p80 = por %p78, %p79
      %p81 = scmp.ne.s32.totalorder %s72, %s73
      %p82 = scmp.eq.s32.totalorder %s20, 0
      %p83 = por %p81, %p82
      %p84 = scmp.ne.s32.totalorder %s72, %s73
      %p85 = scmp.eq.s32.totalorder %s21, 1
      %p86 = por %p84, %p85
      %p88 = scmp.ne.s32.totalorder %s73, %s87
      %p89 = scmp.eq.s32.totalorder %s21, 0
      %p90 = por %p88, %p89
      %s92 = sadd.s32 %s91, 1
      %p95 = scmp.eq.s32.totalorder %s15, 1
      %p96 = scmp.ne.s32.totalorder %s91, %s93
      %p97 = scmp.eq.s32.totalorder %s15, 0
      %p98 = por %p96, %p97
      %p99 = scmp.ne.s32.totalorder %s91, %s93
      %p100 = scmp.eq.s32.totalorder %s20, 1
      %p101 = por %p99, %p100
      %p102 = scmp.ne.s32.totalorder %s93, %s94
      %p103 = scmp.eq.s32.totalorder %s20, 0
      %p104 = por %p102, %p103
      %p105 = scmp.ne.s32.totalorder %s93, %s94
      %p106 = scmp.eq.s32.totalorder %s21, 1
      %p107 = por %p105, %p106
      %p109 = scmp.ne.s32.totalorder %s94, %s108
      %p110 = scmp.eq.s32.totalorder %s21, 0
      %p111 = por %p109, %p110
      %s113 = sadd.s32 %s112, 1
      %p116 = scmp.eq.s32.totalorder %s15, 1
      %p117 = scmp.ne.s32.totalorder %s112, %s114
      %p118 = scmp.eq.s32.totalorder %s15, 0
      %p119 = por %p117, %p118
      %p120 = scmp.ne.s32.totalorder %s112, %s114
      %p121 = scmp.eq.s32.totalorder %s20, 1
      %p122 = por %p120, %p121
      %p123 = scmp.ne.s32.totalorder %s114, %s115
      %p124 = scmp.eq.s32.totalorder %s20, 0
      %p125 = por %p123, %p124
      %p126 = scmp.ne.s32.totalorder %s114, %s115
      %p127 = scmp.eq.s32.totalorder %s21, 1
      %p128 = por %p126, %p127
      %p130 = scmp.ne.s32.totalorder %s115, %s129
      %p131 = scmp.eq.s32.totalorder %s21, 0
      %p132 = por %p130, %p131
      %s133 = ssub.s32 %s15, %s22
      %p134 = scmp.eq.s32.totalorder %s133, 0
      %s136 = sadd.s32 %s135, 1
      %s137 = scalar_select %p134, %s135, %s136
      %p140 = pneg %p134
      %p141 = scmp.eq.s32.totalorder %s15, 1
      %p142 = por %p140, %p141
      %p143 = scmp.ne.s32.totalorder %s135, %s138
      %p144 = scmp.eq.s32.totalorder %s15, 0
      %p145 = por %p143, %p144
      %p146 = scmp.ne.s32.totalorder %s135, %s138
      %p147 = scmp.eq.s32.totalorder %s20, 1
      %p148 = por %p146, %p147
      %p149 = scmp.ne.s32.totalorder %s138, %s139
      %p150 = scmp.eq.s32.totalorder %s20, 0
      %p151 = por %p149, %p150
      %p152 = scmp.ne.s32.totalorder %s138, %s139
      %p153 = scmp.eq.s32.totalorder %s21, 1
      %p154 = por %p152, %p153
      %p156 = scmp.ne.s32.totalorder %s139, %s155
      %p157 = scmp.eq.s32.totalorder %s21, 0
      %p158 = por %p156, %p157
      %p159 = scmp.le.s32.totalorder 1, %s15
      %p160 = scmp.lt.s32.totalorder %s15, 3
      %p161 = pnand %p159, %p160
      %p162 = pneg %p161
      // Predicated region
      $region9: #{tpu_custom_call.1} parent=5 // pred_check
        _
      $region10: #{tpu_custom_call.1} parent=5 // pred_check_branch
        %164 = sbr.rel (%p161) target = $region12
      $region11: #{tpu_custom_call.1} parent=5 // pred_region
        %s165 = ssub.s32 %s15, 1
        // Predicated region
        $region13: #{tpu_custom_call.1} parent=11 // pred_check
          %p166 = pneg %p62
        $region14: #{tpu_custom_call.1} parent=11 // pred_check_branch
          %168 = sbr.rel (%p166) target = $region16
        $region15: #{tpu_custom_call.1} parent=11 // pred_region
          _
        $region16: #{tpu_custom_call.1} parent=11 // pred_fallthru
          _
        // Predicated region
        $region17: #{tpu_custom_call.1} parent=11 // pred_check
          %p169 = pneg %p83
        $region18: #{tpu_custom_call.1} parent=11 // pred_check_branch
          %171 = sbr.rel (%p169) target = $region20
        $region19: #{tpu_custom_call.1} parent=11 // pred_region
          _
        $region20: #{tpu_custom_call.1} parent=11 // pred_fallthru
          _
        // Predicated region
        $region21: #{tpu_custom_call.1} parent=11 // pred_check
          %p172 = pneg %p104
        $region22: #{tpu_custom_call.1} parent=11 // pred_check_branch
          %174 = sbr.rel (%p172) target = $region24
        $region23: #{tpu_custom_call.1} parent=11 // pred_region
          %s176 = ssub.s32 1024, 1024
          %177 = vsyncadd [#allocation3], %s176
          %s178 = sshll.u32 [#allocation2], 4
          %s179 = int_to_ptr.vmem [resolvable:$true] %s178
          %184 = dma.hbm_to_vmem [thread:$0]  %s3, 1024, %s179, [#allocation3], 64, 64, 4
        $region24: #{tpu_custom_call.1} parent=11 // pred_fallthru
          _
        // Predicated region
        $region25: #{tpu_custom_call.1} parent=11 // pred_check
          %p185 = pneg %p125
        $region26: #{tpu_custom_call.1} parent=11 // pred_check_branch
          %187 = sbr.rel (%p185) target = $region28
        $region27: #{tpu_custom_call.1} parent=11 // pred_region
          _
        $region28: #{tpu_custom_call.1} parent=11 // pred_fallthru
          _
      $region12: #{tpu_custom_call.1} parent=5 // pred_fallthru
        _
      %p188 = scmp.lt.s32.totalorder %s15, 2
      // Predicated region
      $region29: #{tpu_custom_call.1} parent=5 // pred_check
        %p189 = pneg %p188
      $region30: #{tpu_custom_call.1} parent=5 // pred_check_branch
        %191 = sbr.rel (%p189) target = $region32
      $region31: #{tpu_custom_call.1} parent=5 // pred_region
        // Predicated region
        $region33: #{tpu_custom_call.1} parent=31 // pred_check
          %p192 = pneg %p35
        $region34: #{tpu_custom_call.1} parent=31 // pred_check_branch
          %194 = sbr.rel (%p192) target = $region36
        $region35: #{tpu_custom_call.1} parent=31 // pred_region
          %s195 = smul.u32 4, %s15
          %s196 = ssub.s32 7, %s195
          %p197 = scmp.lt.s32.totalorder %s196, 4
          %s198 = scalar_select %p197, %s196, 4
          %s199 = smul.u32 128, %s198
          %p200 = scmp.lt.s32.totalorder %s195, 6
          %s201 = scalar_select %p200, %s195, 6
          %s202 = smul.addr %s201, 8
          %s203 = scalar_lea.vmem %s0, %s202
          %s204 = smul.u32 4, %s15
          %s205 = ssub.s32 7, %s204
          %p206 = scmp.lt.s32.totalorder %s205, 4
          %s207 = scalar_select %p206, %s205, 4
          %s208 = smul.u32 128, %s207
        $region36: #{tpu_custom_call.1} parent=31 // pred_fallthru
          _
      $region32: #{tpu_custom_call.1} parent=5 // pred_fallthru
        _
      %p209 = scmp.le.s32.totalorder 1, %s15
      %p210 = scmp.lt.s32.totalorder %s15, 3
      %p211 = pnand %p209, %p210
      %p212 = pneg %p211
      // Predicated region
      $region37: #{tpu_custom_call.1} parent=5 // pred_check
        _
      $region38: #{tpu_custom_call.1} parent=5 // pred_check_branch
        %214 = sbr.rel (%p211) target = $region40
      $region39: #{tpu_custom_call.1} parent=5 // pred_region
        %s215 = ssub.s32 %s15, 1
        // Predicated region
        $region41: #{tpu_custom_call.1} parent=39 // pred_check
          %p216 = pneg %p104
        $region42: #{tpu_custom_call.1} parent=39 // pred_check_branch
          %218 = sbr.rel (%p216) target = $region44
        $region43: #{tpu_custom_call.1} parent=39 // pred_region
          %219 = dma.done [#allocation3], 1024
        $region44: #{tpu_custom_call.1} parent=39 // pred_fallthru
          _
        %s220 = smul.u32 4, %s20
        %s221 = ssub.s32 7, %s220
        %p222 = scmp.lt.s32.totalorder %s221, 4
        %s223 = scalar_select %p222, %s221, 4
        %s224 = smul.u32 128, %s223
        %p225 = scmp.lt.s32.totalorder %s220, 6
        %s226 = scalar_select %p225, %s220, 6
        %s227 = smul.addr %s226, 8
        %s228 = scalar_lea.vmem %s0, %s227
        %p229 = pneg %p41
        %p230 = pneg %p38
        %p231 = pneg %p62
        %p232 = pneg %p59
        %p233 = pneg %p83
        %p234 = pneg %p80
        %p235 = pneg %p104
        %p236 = pneg %p101
        %p237 = pneg %p125
        %p238 = pneg %p122
        %p239 = pneg %p151
        %p240 = pneg %p148
        %s241 = sand.u32 %s138, 1
        %s242 = scalar_lea.sflag [#allocation4], %s241
        %s243 = sand.u32 %s138, 1
        %s244 = smul.addr %s243, 32
        %s245 = scalar_lea.vmem [#allocation5], %s244
        %s246 = smul.u32 4, %s20
        %s247 = ssub.s32 7, %s246
        %p248 = scmp.lt.s32.totalorder %s247, 4
        %s249 = scalar_select %p248, %s247, 4
        %s250 = smul.u32 128, %s249
        %p251 = scmp.lt.s32.totalorder %s246, 6
        %s252 = scalar_select %p251, %s246, 6
        %s253 = smul.addr %s252, 8
        %s254 = scalar_lea.vmem %s0, %s253
        %s255 = smul.u32 4, %s20
        %s256 = ssub.s32 7, %s255
        %p257 = scmp.lt.s32.totalorder %s256, 4
        %s258 = scalar_select %p257, %s256, 4
        %s259 = smul.u32 128, %s258
        %s260 = smul.u32 4, %s20
        %s261 = ssub.s32 7, %s260
        %p262 = scmp.lt.s32.totalorder %s261, 4
        %s263 = scalar_select %p262, %s261, 4
        %s264 = smul.u32 128, %s263
        %v266 = vld [vmem:[%s4] sm:$0x1]
        %v267 = vld [vmem:[%s4 + $0x1] sm:$0x1]
        %v268 = vld [vmem:[%s4 + $0x2] sm:$0x1]
        %v269 = vld [vmem:[%s254] sm:$0xff]
        %v270 = vld [vmem:[%s254 + $0x8] sm:$0xff]
        %v271 = vld [vmem:[%s254 + $0x10] sm:$0xff]
        %v272 = vld [vmem:[%s254 + $0x18] sm:$0xff]
        %v273 = vpack.c.bf16 %v270, %v269
        %v274 = vpack.c.bf16 %v272, %v271
        %v275 = vld [vmem:[%s1] sm:$0xf]
        %v276 = vld [vmem:[%s1 + $0x4] sm:$0xf]
        %v277 = vlaneseq
        %v278 = vshrl.u32 %v277, 7
        %v279 = vsub.s32 0, %v278
        %v280 = vrot.slane %v266, %v279
        %v283 = vunpack.c.l.b16 %v275
        %v284 = vunpack.c.l.b16 %v276
        %v285 = vpack.c.b16 %v284, %v283
        %vm287 = vcmask 130048
        %v289 = vsel %vm287, %v273, 0
        %v292 = vsel %vm287, %v274, 0
        %294 = vmatprep.subr.bf16.mxu0 0
        %295 = vmatpush1.bf16.msra.mxu0 %v285
        %296 = vmatprep.subr.bf16.mxu0 0
        %297 = vmatpush1.bf16.msra.mxu0 0
        %298 = vmatprep.subr.bf16.mxu0 0
        %299 = vmatpush1.bf16.msra.mxu0 0
        %300 = vmatprep.subr.bf16.mxu0 0
        %301 = vmatpush1.bf16.msra.mxu0 0
        %302 = vmatprep.subr.bf16.mxu0 0
        %303 = vmatpush1.bf16.msra.mxu0 0
        %304 = vmatprep.subr.bf16.mxu0 0
        %305 = vmatpush1.bf16.msra.mxu0 0
        %306 = vmatprep.subr.bf16.mxu0 0
        %307 = vmatpush1.bf16.msra.mxu0 0
        %308 = vmatprep.subr.bf16.mxu0 0
        %309 = vmatpush1.bf16.msra.mxu0 0
        %310 = vmatprep.subr.bf16.mxu0 0
        %311 = vmatpush1.bf16.msra.mxu0 0
        %312 = vmatprep.subr.bf16.mxu0 0
        %313 = vmatpush1.bf16.msra.mxu0 0
        %314 = vmatprep.subr.bf16.mxu0 0
        %315 = vmatpush1.bf16.msra.mxu0 0
        %316 = vmatprep.subr.bf16.mxu0 0
        %317 = vmatpush1.bf16.msra.mxu0 0
        %318 = vmatprep.subr.bf16.mxu0 0
        %319 = vmatpush1.bf16.msra.mxu0 0
        %320 = vmatprep.subr.bf16.mxu0 0
        %321 = vmatpush1.bf16.msra.mxu0 0
        %322 = vmatprep.subr.bf16.mxu0 0
        %323 = vmatpush1.bf16.msra.mxu0 0
        %324 = vmatprep.subr.bf16.mxu0 0
        %325 = vmatpush1.bf16.msra.mxu0 0
        %326 = vmatprep.mubr.bf16.mxu0 0
        %327 = vmatmul.mubr.bf16.gmra.mrb[0].mxu0 %v289
        %v328 = vpop.f32.mrb[0].mxu0
        %v329 = vadd.f32 %v280, %v328
        %v330 = vpop.f32.mrb[0].mxu0
        %v331 = vpop.f32.mrb[0].mxu0
        %v332 = vadd.f32 %v280, %v331
        %v333 = vpop.f32.mrb[0].mxu0
        %334 = vmatprep.mubr.bf16.mxu0 0
        %335 = vmatmul.mubr.bf16.gmra.mrb[0].mxu0 %v292
        %v336 = vpop.f32.mrb[0].mxu0
        %v337 = vadd.f32 %v280, %v336
        %v338 = vpop.f32.mrb[0].mxu0
        %v339 = vpop.f32.mrb[0].mxu0
        %v340 = vadd.f32 %v280, %v339
        %v341 = vpop.f32.mrb[0].mxu0
        %342 = vdwg.mxu0
        %v343 = vmax.f32 %v329, 0.0
        %v344 = vmax.f32 %v332, 0.0
        %v345 = vmax.f32 %v337, 0.0
        %v346 = vmax.f32 %v340, 0.0
        %v347 = vpack.c.bf16 %v344, %v343
        %v348 = vpack.c.bf16 %v346, %v345
        %v349 = vld [vmem:[%s2] sm:$0xf]
        %v350 = vld [vmem:[%s2 + $0x4] sm:$0xf]
        %v351 = vld [vmem:[%s2 + $0x8] sm:$0xf]
        %v352 = vld [vmem:[%s2 + $0xc] sm:$0xf]
        %v353 = vld [vmem:[%s2 + $0x10] sm:$0xf]
        %v354 = vld [vmem:[%s2 + $0x14] sm:$0xf]
        %v355 = vld [vmem:[%s2 + $0x18] sm:$0xf]
        %v356 = vld [vmem:[%s2 + $0x1c] sm:$0xf]
        %v357 = vld [vmem:[%s2 + $0x20] sm:$0xf]
        %v358 = vld [vmem:[%s2 + $0x24] sm:$0xf]
        %v359 = vld [vmem:[%s2 + $0x28] sm:$0xf]
        %v360 = vld [vmem:[%s2 + $0x2c] sm:$0xf]
        %v361 = vld [vmem:[%s2 + $0x30] sm:$0xf]
        %v362 = vld [vmem:[%s2 + $0x34] sm:$0xf]
        %v363 = vld [vmem:[%s2 + $0x38] sm:$0xf]
        %v364 = vld [vmem:[%s2 + $0x3c] sm:$0xf]
        %v365 = vlaneseq
        %v366 = vshrl.u32 %v365, 7
        %v367 = vsub.s32 0, %v366
        %v368 = vrot.slane %v267, %v367
        %v385 = vunpack.c.l.b16 %v349
        %v386 = vunpack.c.l.b16 %v350
        %v387 = vunpack.c.l.b16 %v351
        %v388 = vunpack.c.l.b16 %v352
        %v389 = vunpack.c.l.b16 %v353
        %v390 = vunpack.c.l.b16 %v354
        %v391 = vunpack.c.l.b16 %v355
        %v392 = vunpack.c.l.b16 %v356
        %v393 = vunpack.c.l.b16 %v357
        %v394 = vunpack.c.l.b16 %v358
        %v395 = vunpack.c.l.b16 %v359
        %v396 = vunpack.c.l.b16 %v360
        %v397 = vunpack.c.l.b16 %v361
        %v398 = vunpack.c.l.b16 %v362
        %v399 = vunpack.c.l.b16 %v363
        %v400 = vunpack.c.l.b16 %v364
        %v401 = vpack.c.b16 %v386, %v385
        %v402 = vpack.c.b16 %v388, %v387
        %v403 = vpack.c.b16 %v390, %v389
        %v404 = vpack.c.b16 %v392, %v391
        %v405 = vpack.c.b16 %v394, %v393
        %v406 = vpack.c.b16 %v396, %v395
        %v407 = vpack.c.b16 %v398, %v397
        %v408 = vpack.c.b16 %v400, %v399
        %417 = vmatprep.subr.bf16.mxu0 0
        %418 = vmatpush1.bf16.msra.mxu0 %v401
        %419 = vmatprep.subr.bf16.mxu0 0
        %420 = vmatpush1.bf16.msra.mxu0 %v402
        %421 = vmatprep.subr.bf16.mxu0 0
        %422 = vmatpush1.bf16.msra.mxu0 %v403
        %423 = vmatprep.subr.bf16.mxu0 0
        %424 = vmatpush1.bf16.msra.mxu0 %v404
        %425 = vmatprep.subr.bf16.mxu0 0
        %426 = vmatpush1.bf16.msra.mxu0 %v405
        %427 = vmatprep.subr.bf16.mxu0 0
        %428 = vmatpush1.bf16.msra.mxu0 %v406
        %429 = vmatprep.subr.bf16.mxu0 0
        %430 = vmatpush1.bf16.msra.mxu0 %v407
        %431 = vmatprep.subr.bf16.mxu0 0
        %432 = vmatpush1.bf16.msra.mxu0 %v408
        %433 = vmatprep.subr.bf16.mxu0 0
        %434 = vmatpush1.bf16.msra.mxu0 0
        %435 = vmatprep.subr.bf16.mxu0 0
        %436 = vmatpush1.bf16.msra.mxu0 0
        %437 = vmatprep.subr.bf16.mxu0 0
        %438 = vmatpush1.bf16.msra.mxu0 0
        %439 = vmatprep.subr.bf16.mxu0 0
        %440 = vmatpush1.bf16.msra.mxu0 0
        %441 = vmatprep.subr.bf16.mxu0 0
        %442 = vmatpush1.bf16.msra.mxu0 0
        %443 = vmatprep.subr.bf16.mxu0 0
        %444 = vmatpush1.bf16.msra.mxu0 0
        %445 = vmatprep.subr.bf16.mxu0 0
        %446 = vmatpush1.bf16.msra.mxu0 0
        %447 = vmatprep.subr.bf16.mxu0 0
        %448 = vmatpush1.bf16.msra.mxu0 0
        %449 = vmatprep.mubr.bf16.mxu0 0
        %450 = vmatmul.mubr.bf16.gmra.mrb[0].mxu0 %v347
        %v451 = vpop.f32.mrb[0].mxu0
        %v452 = vadd.f32 %v368, %v451
        %v453 = vpop.f32.mrb[0].mxu0
        %v454 = vpop.f32.mrb[0].mxu0
        %v455 = vadd.f32 %v368, %v454
        %v456 = vpop.f32.mrb[0].mxu0
        %457 = vmatprep.mubr.bf16.mxu0 0
        %458 = vmatmul.mubr.bf16.gmra.mrb[0].mxu0 %v348
        %v459 = vpop.f32.mrb[0].mxu0
        %v460 = vadd.f32 %v368, %v459
        %v461 = vpop.f32.mrb[0].mxu0
        %v462 = vpop.f32.mrb[0].mxu0
        %v463 = vadd.f32 %v368, %v462
        %v464 = vpop.f32.mrb[0].mxu0
        %465 = vdwg.mxu0
        %v466 = vmax.f32 %v452, 0.0
        %v467 = vmax.f32 %v455, 0.0
        %v468 = vmax.f32 %v460, 0.0
        %v469 = vmax.f32 %v463, 0.0
        %v470 = vpack.c.bf16 %v467, %v466
        %v471 = vpack.c.bf16 %v469, %v468
        %v472 = vld [vmem:[#allocation2] sm:$0xf]
        %v473 = vld [vmem:[#allocation2 + $0x4] sm:$0xf]
        %v474 = vld [vmem:[#allocation2 + $0x8] sm:$0xf]
        %v475 = vld [vmem:[#allocation2 + $0xc] sm:$0xf]
        %v476 = vld [vmem:[#allocation2 + $0x10] sm:$0xf]
        %v477 = vld [vmem:[#allocation2 + $0x14] sm:$0xf]
        %v478 = vld [vmem:[#allocation2 + $0x18] sm:$0xf]
        %v479 = vld [vmem:[#allocation2 + $0x1c] sm:$0xf]
        %v480 = vld [vmem:[#allocation2 + $0x20] sm:$0xf]
        %v481 = vld [vmem:[#allocation2 + $0x24] sm:$0xf]
        %v482 = vld [vmem:[#allocation2 + $0x28] sm:$0xf]
        %v483 = vld [vmem:[#allocation2 + $0x2c] sm:$0xf]
        %v484 = vld [vmem:[#allocation2 + $0x30] sm:$0xf]
        %v485 = vld [vmem:[#allocation2 + $0x34] sm:$0xf]
        %v486 = vld [vmem:[#allocation2 + $0x38] sm:$0xf]
        %v487 = vld [vmem:[#allocation2 + $0x3c] sm:$0xf]
        %v488 = vlaneseq
        %v489 = vshrl.u32 %v488, 7
        %v490 = vsub.s32 0, %v489
        %v491 = vrot.slane %v268, %v490
        %v508 = vunpack.c.l.b16 %v472
        %v509 = vunpack.c.l.b16 %v473
        %v510 = vunpack.c.l.b16 %v474
        %v511 = vunpack.c.l.b16 %v475
        %v512 = vunpack.c.l.b16 %v476
        %v513 = vunpack.c.l.b16 %v477
        %v514 = vunpack.c.l.b16 %v478
        %v515 = vunpack.c.l.b16 %v479
        %v516 = vunpack.c.l.b16 %v480
        %v517 = vunpack.c.l.b16 %v481
        %v518 = vunpack.c.l.b16 %v482
        %v519 = vunpack.c.l.b16 %v483
        %v520 = vunpack.c.l.b16 %v484
        %v521 = vunpack.c.l.b16 %v485
        %v522 = vunpack.c.l.b16 %v486
        %v523 = vunpack.c.l.b16 %v487
        %v524 = vpack.c.b16 %v509, %v508
        %v525 = vpack.c.b16 %v511, %v510
        %v526 = vpack.c.b16 %v513, %v512
        %v527 = vpack.c.b16 %v515, %v514
        %v528 = vpack.c.b16 %v517, %v516
        %v529 = vpack.c.b16 %v519, %v518
        %v530 = vpack.c.b16 %v521, %v520
        %v531 = vpack.c.b16 %v523, %v522
        %540 = vmatprep.subr.bf16.mxu0 0
        %541 = vmatpush1.bf16.msra.mxu0 %v524
        %542 = vmatprep.subr.bf16.mxu0 0
        %543 = vmatpush1.bf16.msra.mxu0 %v525
        %544 = vmatprep.subr.bf16.mxu0 0
        %545 = vmatpush1.bf16.msra.mxu0 %v526
        %546 = vmatprep.subr.bf16.mxu0 0
        %547 = vmatpush1.bf16.msra.mxu0 %v527
        %548 = vmatprep.subr.bf16.mxu0 0
        %549 = vmatpush1.bf16.msra.mxu0 %v528
        %550 = vmatprep.subr.bf16.mxu0 0
        %551 = vmatpush1.bf16.msra.mxu0 %v529
        %552 = vmatprep.subr.bf16.mxu0 0
        %553 = vmatpush1.bf16.msra.mxu0 %v530
        %554 = vmatprep.subr.bf16.mxu0 0
        %555 = vmatpush1.bf16.msra.mxu0 %v531
        %556 = vmatprep.subr.bf16.mxu0 0
        %557 = vmatpush1.bf16.msra.mxu0 0
        %558 = vmatprep.subr.bf16.mxu0 0
        %559 = vmatpush1.bf16.msra.mxu0 0
        %560 = vmatprep.subr.bf16.mxu0 0
        %561 = vmatpush1.bf16.msra.mxu0 0
        %562 = vmatprep.subr.bf16.mxu0 0
        %563 = vmatpush1.bf16.msra.mxu0 0
        %564 = vmatprep.subr.bf16.mxu0 0
        %565 = vmatpush1.bf16.msra.mxu0 0
        %566 = vmatprep.subr.bf16.mxu0 0
        %567 = vmatpush1.bf16.msra.mxu0 0
        %568 = vmatprep.subr.bf16.mxu0 0
        %569 = vmatpush1.bf16.msra.mxu0 0
        %570 = vmatprep.subr.bf16.mxu0 0
        %571 = vmatpush1.bf16.msra.mxu0 0
        %572 = vmatprep.mubr.bf16.mxu0 0
        %573 = vmatmul.mubr.bf16.gmra.mrb[0].mxu0 %v470
        %v574 = vpop.f32.mrb[0].mxu0
        %v575 = vadd.f32 %v491, %v574
        %v576 = vpop.f32.mrb[0].mxu0
        %v577 = vpop.f32.mrb[0].mxu0
        %v578 = vadd.f32 %v491, %v577
        %v579 = vpop.f32.mrb[0].mxu0
        %580 = vmatprep.mubr.bf16.mxu0 0
        %581 = vmatmul.mubr.bf16.gmra.mrb[0].mxu0 %v471
        %v582 = vpop.f32.mrb[0].mxu0
        %v583 = vadd.f32 %v491, %v582
        %v584 = vpop.f32.mrb[0].mxu0
        %v585 = vpop.f32.mrb[0].mxu0
        %v586 = vadd.f32 %v491, %v585
        %v587 = vpop.f32.mrb[0].mxu0
        %588 = vdwg.mxu0
        %589 = vmax.xlane.f32.xlu0 %v575
        %v590 = vpop.xlane.xlu0 %589
        %591 = vmax.xlane.f32.xlu0 %v578
        %v592 = vpop.xlane.xlu0 %591
        %593 = vmax.xlane.f32.xlu0 %v583
        %v594 = vpop.xlane.xlu0 %593
        %595 = vmax.xlane.f32.xlu0 %v586
        %v596 = vpop.xlane.xlu0 %595
        %v597 = vsub.f32 %v575, %v590
        %v598 = vsub.f32 %v578, %v592
        %v599 = vsub.f32 %v583, %v594
        %v600 = vsub.f32 %v586, %v596
        %v601 = vmul.f32 %v597, 1.442695
        %v602 = vpow.pop %v601
        %v603 = vmul.f32 %v598, 1.442695
        %v604 = vpow.pop %v603
        %v605 = vmul.f32 %v599, 1.442695
        %v606 = vpow.pop %v605
        %v607 = vmul.f32 %v600, 1.442695
        %v608 = vpow.pop %v607
        %609 = vadd.xlane.f32.xlu0 %v602
        %v610 = vpop.xlane.xlu0 %609
        %611 = vadd.xlane.f32.xlu0 %v604
        %v612 = vpop.xlane.xlu0 %611
        %613 = vadd.xlane.f32.xlu0 %v606
        %v614 = vpop.xlane.xlu0 %613
        %615 = vadd.xlane.f32.xlu0 %v608
        %v616 = vpop.xlane.xlu0 %615
        %v617 = vrcp.pop %v610
        %v618 = vmul.f32 %v602, %v617
        %v619 = vrcp.pop %v612
        %v620 = vmul.f32 %v604, %v619
        %v621 = vrcp.pop %v614
        %v622 = vmul.f32 %v606, %v621
        %v623 = vrcp.pop %v616
        %v624 = vmul.f32 %v608, %v623
        %625 = vst [vmem:[%s245] sm:$0xff] %v618
        %626 = vst [vmem:[%s245 + $0x8] sm:$0xff] %v620
        %627 = vst [vmem:[%s245 + $0x10] sm:$0xff] %v622
        %628 = vst [vmem:[%s245 + $0x18] sm:$0xff] %v624
        %s629 = sand.u32 %s138, 1
        %s630 = scalar_lea.sflag [#allocation4], %s629
        %s631 = sand.u32 %s138, 1
        %s632 = smul.addr %s631, 32
        %s633 = scalar_lea.vmem [#allocation5], %s632
        // Predicated region
        $region45: #{tpu_custom_call.1} parent=39 // pred_check
          %p634 = pneg %p148
        $region46: #{tpu_custom_call.1} parent=39 // pred_check_branch
          %636 = sbr.rel (%p634) target = $region48
        $region47: #{tpu_custom_call.1} parent=39 // pred_region
          %s637 = smul.u32 4, %s20
          %s638 = ssub.s32 7, %s637
          %p639 = scmp.lt.s32.totalorder %s638, 4
          %s640 = scalar_select %p639, %s638, 4
          %s641 = smul.u32 128, %s640
          %s643 = ssub.s32 512, %s641
          %644 = vsyncadd %s630, %s643
          %p645 = scmp.ne.s32.totalorder 0, %s641
          %s646 = smul.addr %s637, 128
          %s647 = scalar_lea.hbm %s5, %s646
          %s648 = smul.u32 8, %s640
          %s649 = sshll.u32 %s633, 4
          %s650 = int_to_ptr.vmem [resolvable:$true] %s649
          %s651 = sshll.u32 %s648, 4
          %655 = dma.vmem_to_hbm [thread:$0]  (%p645), %s650, %s651, %s647, %s630, 128, 128, 8
        $region48: #{tpu_custom_call.1} parent=39 // pred_fallthru
          _
      $region40: #{tpu_custom_call.1} parent=5 // pred_fallthru
        _
      %p656 = scmp.le.s32.totalorder 2, %s15
      // Predicated region
      $region49: #{tpu_custom_call.1} parent=5 // pred_check
        %p657 = pneg %p656
      $region50: #{tpu_custom_call.1} parent=5 // pred_check_branch
        %659 = sbr.rel (%p657) target = $region52
      $region51: #{tpu_custom_call.1} parent=5 // pred_region
        %s660 = ssub.s32 %s15, 2
        // Predicated region
        $region53: #{tpu_custom_call.1} parent=51 // pred_check
          %p661 = pneg %p154
        $region54: #{tpu_custom_call.1} parent=51 // pred_check_branch
          %663 = sbr.rel (%p661) target = $region56
        $region55: #{tpu_custom_call.1} parent=51 // pred_region
          %s664 = sand.u32 %s139, 1
          %s665 = scalar_lea.sflag [#allocation4], %s664
          %s666 = sand.u32 %s139, 1
          %s667 = smul.addr %s666, 32
          %s668 = scalar_lea.vmem [#allocation5], %s667
          %669 = dma.done %s665, 512
        $region56: #{tpu_custom_call.1} parent=51 // pred_fallthru
          _
      $region52: #{tpu_custom_call.1} parent=5 // pred_fallthru
        _
    $region6: #{tpu_custom_call.1} parent=1 // loop_footer
      %s19 = sadd.s32 1, %s15
    $region7: #{tpu_custom_call.1} parent=1 // loop_footer_branch
      %14 = sbr.rel target = $region3
    $region8: #{tpu_custom_call.1} parent=1 // loop_exit
      _
    %670 = vsyncpa [#allocation3], 1
    %s671 = scalar_lea.sflag [#allocation3], 1
    %672 = vsyncpa %s671, 1
    %673 = vsyncpa [#allocation4], 1
    %s674 = scalar_lea.sflag [#allocation4], 1
    %675 = vsyncpa %s674, 1

</llo_original>
